<compile_context>
chip_gen: v6e
topology: v6e:2x2x1
jax: 0.10.0
libtpu: 0.0.40
codegen_flags: <defaults>
</compile_context>

<pallas_src>
import functools

import jax
import jax.numpy as jnp
from jax.experimental import pallas as pl
from jax.experimental.pallas import tpu as pltpu

IN_DIM = 16             # hard-coded nn.Linear(16, hidden_dim) in the module
HIDDEN_DIM = 32
MAX_BLOCK_ROWS = 16384  # rows per grid step (lane dim of the compute layout)
SPLIT_THRESHOLD = 1024  # below this: one exact block; above: aim for >= 2 steps
LANE = 128


def _round_up(n, m):
    return (n + m - 1) // m * m


def _causal_kernel(x_ref,
                   w1_ref, b1_ref,
                   w2_ref, b2_ref,
                   w3_ref, b3_ref,
                   w4_ref, b4_ref,
                   te_ref, feat_ref,
                   *, approximate_gelu):
    gelu = lambda v: jax.nn.gelu(v, approximate=approximate_gelu)
    dot_kw = dict(preferred_element_type=jnp.float32,
                  precision=jax.lax.Precision.HIGHEST)

    x = x_ref[...]                                               # (R, 16) row-major

    # dim_reduce: Linear(16, H) + GELU (+ Dropout == identity at inference).
    # Trans-B matmul folds the row-major -> feature-major layout change into the
    # MXU: contract the 16-feature axis of both operands -> (H, R), lane-dense.
    h = jax.lax.dot_general(w1_ref[...], x, (((1,), (1,)), ((), ())), **dot_kw)
    h = gelu(h + b1_ref[...])                                    # (H, R)

    # feature_net: Linear(H, H) + GELU (+ Dropout == identity).
    f = jnp.dot(w2_ref[...], h, **dot_kw)
    f = gelu(f + b2_ref[...])                                    # (H, R)

    # treatment_net: Linear(H, H) + GELU + Linear(H, 16).
    t = jnp.dot(w3_ref[...], f, **dot_kw)
    t = gelu(t + b3_ref[...])
    t = jnp.dot(w4_ref[...], t, **dot_kw) + b4_ref[...]          # (16, R)

    # Back to row-major inside the kernel (XLU transposes; no wrapper .T,
    # VMEM->HBM writeback stays the minimal 192 B/row).
    te_ref[...] = t.T.astype(te_ref.dtype)                       # (R, 16)
    feat_ref[...] = f.T.astype(feat_ref.dtype)                   # (R, H)


@functools.partial(jax.jit,
                   static_argnames=("hidden_dim", "approximate_gelu", "out_dtype"))
def causal_estimator_forward(x, params, hidden_dim=HIDDEN_DIM, *,
                             approximate_gelu=True, out_dtype=jnp.float32):
    """Forward pass of CausalEstimator.

    x: (..., 16).  Like the PyTorch module, rank > 3 inputs are flattened to
    (N, 16) and the outputs are returned flattened: (N, 16), (N, hidden).
    Rank <= 3 inputs keep their leading dims.  Dropout is identity (inference).
    approximate_gelu=True uses tanh GELU (fast, EUP); False matches
    torch.nn.GELU()'s exact erf.
    """
    orig_shape = x.shape
    assert orig_shape[-1] == IN_DIM
    xf = x.reshape(-1, IN_DIM)            # free for contiguous row-major input
    n_rows = xf.shape[0]

    # Row-tile selection (no pad, no slice; ragged last block is masked):
    #  * small N: one exact block (block == full row dim, nothing masked)
    #  * larger N: ~n_rows/2 per block so the "parallel" grid has >= 2 steps
    #    (keeps both v7x TensorCores busy), capped at MAX_BLOCK_ROWS so the
    #    double-buffered working set (~18 MiB at 16k rows) fits every gen.
    if n_rows <= SPLIT_THRESHOLD:
        block_rows = n_rows
    else:
        block_rows = min(MAX_BLOCK_ROWS, _round_up(pl.cdiv(n_rows, 2), LANE))
    grid = (pl.cdiv(n_rows, block_rows),)

    w1, b1, w2, b2, w3, b3, w4, b4 = params

    rows = lambda i: (i, 0)
    const = lambda i: (0, 0)

    te, feat = pl.pallas_call(
        functools.partial(_causal_kernel, approximate_gelu=approximate_gelu),
        out_shape=(
            jax.ShapeDtypeStruct((n_rows, IN_DIM), out_dtype),
            jax.ShapeDtypeStruct((n_rows, hidden_dim), out_dtype),
        ),
        grid=grid,
        in_specs=[
            pl.BlockSpec((block_rows, IN_DIM), rows),        # x tile, row-major
            pl.BlockSpec((hidden_dim, IN_DIM), const),       # w1 (out, in)
            pl.BlockSpec((hidden_dim, 1), const),            # b1 (out, 1)
            pl.BlockSpec((hidden_dim, hidden_dim), const),   # w2
            pl.BlockSpec((hidden_dim, 1), const),            # b2
            pl.BlockSpec((hidden_dim, hidden_dim), const),   # w3
            pl.BlockSpec((hidden_dim, 1), const),            # b3
            pl.BlockSpec((IN_DIM, hidden_dim), const),       # w4
            pl.BlockSpec((IN_DIM, 1), const),                # b4
        ],
        out_specs=(
            pl.BlockSpec((block_rows, IN_DIM), rows),        # treatment_effects
            pl.BlockSpec((block_rows, hidden_dim), rows),    # features
        ),
        compiler_params=pltpu.CompilerParams(
            dimension_semantics=("parallel",),
            vmem_limit_bytes=48 * 1024 * 1024),
    )(xf, w1, b1, w2, b2, w3, b3, w4, b4)

    if len(orig_shape) > 3:
        # PyTorch module returns flattened outputs in this case.
        return te, feat
    lead = orig_shape[:-1]
    return te.reshape(*lead, IN_DIM), feat.reshape(*lead, hidden_dim)


def init_params(key, hidden_dim=HIDDEN_DIM):
    """Deterministic init mimicking nn.Linear default U(-1/sqrt(fan_in), +).

    Weights in PyTorch layout (out_features, in_features); biases as
    (out_features, 1) columns (broadcast over lanes in the feature-major kernel).
    """
    def linear(k, fan_in, fan_out):
        kw, kb = jax.random.split(k)
        bound = 1.0 / jnp.sqrt(fan_in)
        w = jax.random.uniform(kw, (fan_out, fan_in), jnp.float32, -bound, bound)
        b = jax.random.uniform(kb, (fan_out, 1), jnp.float32, -bound, bound)
        return w, b

    k1, k2, k3, k4 = jax.random.split(key, 4)
    w1, b1 = linear(k1, IN_DIM, hidden_dim)      # dim_reduce.Linear(16, H)
    w2, b2 = linear(k2, hidden_dim, hidden_dim)  # feature_net.Linear(H, H)
    w3, b3 = linear(k3, hidden_dim, hidden_dim)  # treatment_net.Linear(H, H)
    w4, b4 = linear(k4, hidden_dim, IN_DIM)      # treatment_net.Linear(H, 16)
    return (w1, b1, w2, b2, w3, b3, w4, b4)


def _reference(xf, params, approximate_gelu=True):
    """Pure-JAX reference (same GELU flavor and matmul precision as the kernel)."""
    w1, b1, w2, b2, w3, b3, w4, b4 = params
    g = lambda v: jax.nn.gelu(v, approximate=approximate_gelu)
    hp = jax.lax.Precision.HIGHEST
    h = g(jnp.dot(xf, w1.T, precision=hp) + b1.T)
    f = g(jnp.dot(h, w2.T, precision=hp) + b2.T)
    t = jnp.dot(g(jnp.dot(f, w3.T, precision=hp) + b3.T), w4.T, precision=hp) + b4.T
    return t, f


if __name__ == "__main__":
    key = jax.random.PRNGKey(0)
    kp, kx1, kx2 = jax.random.split(key, 3)
    params = init_params(kp, HIDDEN_DIM)

    # Case 1: small 5-D input (B, T, H, W, 16) -> module flattens to (N, 16)
    # and returns flattened outputs.  Single exact block, grid = (1,).
    x1 = jax.random.normal(kx1, (2, 2, 4, 4, IN_DIM), dtype=jnp.float32)
    te1, feat1 = causal_estimator_forward(x1, params)
    jax.block_until_ready((te1, feat1))
    assert te1.shape == (64, IN_DIM) and feat1.shape == (64, HIDDEN_DIM)
    t_ref1, f_ref1 = _reference(x1.reshape(-1, IN_DIM), params, approximate_gelu=True)
    assert jnp.allclose(feat1, f_ref1, atol=1e-4, rtol=1e-4)
    assert jnp.allclose(te1, t_ref1, atol=1e-4, rtol=1e-4)

    # Case 2: 3-D input (leading dims preserved), N = 2500 rows -> 2-step
    # "parallel" grid with a masked ragged last block (no pad / slice copies).
    x2 = jax.random.normal(kx2, (4, 625, IN_DIM), dtype=jnp.float32)
    te2, feat2 = causal_estimator_forward(x2, params)
    jax.block_until_ready((te2, feat2))
    assert te2.shape == (4, 625, IN_DIM) and feat2.shape == (4, 625, HIDDEN_DIM)
    t_ref2, f_ref2 = _reference(x2.reshape(-1, IN_DIM), params, approximate_gelu=True)
    assert jnp.allclose(feat2.reshape(-1, HIDDEN_DIM), f_ref2, atol=1e-4, rtol=1e-4)
    assert jnp.allclose(te2.reshape(-1, IN_DIM), t_ref2, atol=1e-4, rtol=1e-4)

    # Case 3: exact (erf) GELU path — parity with torch.nn.GELU() default.
    te3, feat3 = causal_estimator_forward(x1, params, approximate_gelu=False)
    jax.block_until_ready((te3, feat3))
    t_ref3, f_ref3 = _reference(x1.reshape(-1, IN_DIM), params, approximate_gelu=False)
    assert jnp.allclose(feat3, f_ref3, atol=1e-4, rtol=1e-4)
    assert jnp.allclose(te3, t_ref3, atol=1e-4, rtol=1e-4)

    print("KERNEL_OK")
</pallas_src>

<mosaic_0001>
module attributes {stable_mosaic.version = 11 : i64} {
  func.func @_causal_kernel(%arg0: i32, %arg1: memref<64x16xf32, #tpu.memory_space<vmem>>, %arg2: memref<32x16xf32, #tpu.memory_space<vmem>>, %arg3: memref<32x1xf32, #tpu.memory_space<vmem>>, %arg4: memref<32x32xf32, #tpu.memory_space<vmem>>, %arg5: memref<32x1xf32, #tpu.memory_space<vmem>>, %arg6: memref<32x32xf32, #tpu.memory_space<vmem>>, %arg7: memref<32x1xf32, #tpu.memory_space<vmem>>, %arg8: memref<16x32xf32, #tpu.memory_space<vmem>>, %arg9: memref<16x1xf32, #tpu.memory_space<vmem>>, %arg10: memref<64x16xf32, #tpu.memory_space<vmem>>, %arg11: memref<64x32xf32, #tpu.memory_space<vmem>>) attributes {dimension_semantics = [#tpu.dimension_semantics<parallel>], iteration_bounds = array<i64: 1>, scalar_prefetch = 0 : i64, scratch_operands = 0 : i64, tpu.core_type = #tpu.core_type<tc>, window_params = [{transform_indices = @transform_0, window_bounds = array<i64: 64, 16>}, {pipeline_mode = #tpu.pipeline_mode<synchronous>, transform_indices = @transform_1, window_bounds = array<i64: 32, 16>}, {pipeline_mode = #tpu.pipeline_mode<synchronous>, transform_indices = @transform_2, window_bounds = array<i64: 32, 1>}, {pipeline_mode = #tpu.pipeline_mode<synchronous>, transform_indices = @transform_3, window_bounds = array<i64: 32, 32>}, {pipeline_mode = #tpu.pipeline_mode<synchronous>, transform_indices = @transform_4, window_bounds = array<i64: 32, 1>}, {pipeline_mode = #tpu.pipeline_mode<synchronous>, transform_indices = @transform_5, window_bounds = array<i64: 32, 32>}, {pipeline_mode = #tpu.pipeline_mode<synchronous>, transform_indices = @transform_6, window_bounds = array<i64: 32, 1>}, {pipeline_mode = #tpu.pipeline_mode<synchronous>, transform_indices = @transform_7, window_bounds = array<i64: 16, 32>}, {pipeline_mode = #tpu.pipeline_mode<synchronous>, transform_indices = @transform_8, window_bounds = array<i64: 16, 1>}, {transform_indices = @transform_9, window_bounds = array<i64: 64, 16>}, {transform_indices = @transform_10, window_bounds = array<i64: 64, 32>}]} {
    %c0 = arith.constant 0 : index
    %c0_0 = arith.constant 0 : index
    %0 = vector.load %arg1[%c0, %c0_0] : memref<64x16xf32, #tpu.memory_space<vmem>>, vector<64x16xf32>
    %c0_1 = arith.constant 0 : index
    %c0_2 = arith.constant 0 : index
    %1 = vector.load %arg2[%c0_1, %c0_2] : memref<32x16xf32, #tpu.memory_space<vmem>>, vector<32x16xf32>
    %cst = arith.constant dense<0.000000e+00> : vector<32x64xf32>
    %2 = tpu.matmul %1, %0, %cst {dimension_numbers = #tpu.dot_dimension_numbers<[1], [1], [0], [0], [0, 0, 1, 0], [], []>, precision = #tpu.contract_precision<fp32>} : vector<32x16xf32>, vector<64x16xf32>, vector<32x64xf32> -> vector<32x64xf32>
    %c0_3 = arith.constant 0 : index
    %c0_4 = arith.constant 0 : index
    %3 = vector.load %arg3[%c0_3, %c0_4] : memref<32x1xf32, #tpu.memory_space<vmem>>, vector<32x1xf32>
    %4 = vector.broadcast %3 : vector<32x1xf32> to vector<32x64xf32>
    %5 = arith.addf %2, %4 : vector<32x64xf32>
    %6 = arith.mulf %5, %5 : vector<32x64xf32>
    %7 = arith.mulf %5, %6 : vector<32x64xf32>
    %cst_5 = arith.constant 4.471500e-02 : f32
    %8 = vector.broadcast %cst_5 : f32 to vector<32x64xf32>
    %9 = arith.mulf %8, %7 : vector<32x64xf32>
    %10 = arith.addf %5, %9 : vector<32x64xf32>
    %cst_6 = arith.constant 0.797884583 : f32
    %11 = vector.broadcast %cst_6 : f32 to vector<32x64xf32>
    %12 = arith.mulf %11, %10 : vector<32x64xf32>
    %13 = math.tanh %12 : vector<32x64xf32>
    %cst_7 = arith.constant 1.000000e+00 : f32
    %14 = vector.broadcast %cst_7 : f32 to vector<32x64xf32>
    %15 = arith.addf %14, %13 : vector<32x64xf32>
    %cst_8 = arith.constant 5.000000e-01 : f32
    %16 = vector.broadcast %cst_8 : f32 to vector<32x64xf32>
    %17 = arith.mulf %16, %15 : vector<32x64xf32>
    %18 = arith.mulf %5, %17 : vector<32x64xf32>
    %c0_9 = arith.constant 0 : index
    %c0_10 = arith.constant 0 : index
    %19 = vector.load %arg4[%c0_9, %c0_10] : memref<32x32xf32, #tpu.memory_space<vmem>>, vector<32x32xf32>
    %cst_11 = arith.constant dense<0.000000e+00> : vector<32x64xf32>
    %20 = tpu.matmul %19, %18, %cst_11 {dimension_numbers = #tpu.dot_dimension_numbers<[1], [0], [0], [1], [0, 0, 1, 1], [], []>, precision = #tpu.contract_precision<fp32>} : vector<32x32xf32>, vector<32x64xf32>, vector<32x64xf32> -> vector<32x64xf32>
    %c0_12 = arith.constant 0 : index
    %c0_13 = arith.constant 0 : index
    %21 = vector.load %arg5[%c0_12, %c0_13] : memref<32x1xf32, #tpu.memory_space<vmem>>, vector<32x1xf32>
    %22 = vector.broadcast %21 : vector<32x1xf32> to vector<32x64xf32>
    %23 = arith.addf %20, %22 : vector<32x64xf32>
    %24 = arith.mulf %23, %23 : vector<32x64xf32>
    %25 = arith.mulf %23, %24 : vector<32x64xf32>
    %cst_14 = arith.constant 4.471500e-02 : f32
    %26 = vector.broadcast %cst_14 : f32 to vector<32x64xf32>
    %27 = arith.mulf %26, %25 : vector<32x64xf32>
    %28 = arith.addf %23, %27 : vector<32x64xf32>
    %cst_15 = arith.constant 0.797884583 : f32
    %29 = vector.broadcast %cst_15 : f32 to vector<32x64xf32>
    %30 = arith.mulf %29, %28 : vector<32x64xf32>
    %31 = math.tanh %30 : vector<32x64xf32>
    %cst_16 = arith.constant 1.000000e+00 : f32
    %32 = vector.broadcast %cst_16 : f32 to vector<32x64xf32>
    %33 = arith.addf %32, %31 : vector<32x64xf32>
    %cst_17 = arith.constant 5.000000e-01 : f32
    %34 = vector.broadcast %cst_17 : f32 to vector<32x64xf32>
    %35 = arith.mulf %34, %33 : vector<32x64xf32>
    %36 = arith.mulf %23, %35 : vector<32x64xf32>
    %c0_18 = arith.constant 0 : index
    %c0_19 = arith.constant 0 : index
    %37 = vector.load %arg6[%c0_18, %c0_19] : memref<32x32xf32, #tpu.memory_space<vmem>>, vector<32x32xf32>
    %cst_20 = arith.constant dense<0.000000e+00> : vector<32x64xf32>
    %38 = tpu.matmul %37, %36, %cst_20 {dimension_numbers = #tpu.dot_dimension_numbers<[1], [0], [0], [1], [0, 0, 1, 1], [], []>, precision = #tpu.contract_precision<fp32>} : vector<32x32xf32>, vector<32x64xf32>, vector<32x64xf32> -> vector<32x64xf32>
    %c0_21 = arith.constant 0 : index
    %c0_22 = arith.constant 0 : index
    %39 = vector.load %arg7[%c0_21, %c0_22] : memref<32x1xf32, #tpu.memory_space<vmem>>, vector<32x1xf32>
    %40 = vector.broadcast %39 : vector<32x1xf32> to vector<32x64xf32>
    %41 = arith.addf %38, %40 : vector<32x64xf32>
    %42 = arith.mulf %41, %41 : vector<32x64xf32>
    %43 = arith.mulf %41, %42 : vector<32x64xf32>
    %cst_23 = arith.constant 4.471500e-02 : f32
    %44 = vector.broadcast %cst_23 : f32 to vector<32x64xf32>
    %45 = arith.mulf %44, %43 : vector<32x64xf32>
    %46 = arith.addf %41, %45 : vector<32x64xf32>
    %cst_24 = arith.constant 0.797884583 : f32
    %47 = vector.broadcast %cst_24 : f32 to vector<32x64xf32>
    %48 = arith.mulf %47, %46 : vector<32x64xf32>
    %49 = math.tanh %48 : vector<32x64xf32>
    %cst_25 = arith.constant 1.000000e+00 : f32
    %50 = vector.broadcast %cst_25 : f32 to vector<32x64xf32>
    %51 = arith.addf %50, %49 : vector<32x64xf32>
    %cst_26 = arith.constant 5.000000e-01 : f32
    %52 = vector.broadcast %cst_26 : f32 to vector<32x64xf32>
    %53 = arith.mulf %52, %51 : vector<32x64xf32>
    %54 = arith.mulf %41, %53 : vector<32x64xf32>
    %c0_27 = arith.constant 0 : index
    %c0_28 = arith.constant 0 : index
    %55 = vector.load %arg8[%c0_27, %c0_28] : memref<16x32xf32, #tpu.memory_space<vmem>>, vector<16x32xf32>
    %cst_29 = arith.constant dense<0.000000e+00> : vector<16x64xf32>
    %56 = tpu.matmul %55, %54, %cst_29 {dimension_numbers = #tpu.dot_dimension_numbers<[1], [0], [0], [1], [0, 0, 1, 1], [], []>, precision = #tpu.contract_precision<fp32>} : vector<16x32xf32>, vector<32x64xf32>, vector<16x64xf32> -> vector<16x64xf32>
    %c0_30 = arith.constant 0 : index
    %c0_31 = arith.constant 0 : index
    %57 = vector.load %arg9[%c0_30, %c0_31] : memref<16x1xf32, #tpu.memory_space<vmem>>, vector<16x1xf32>
    %58 = vector.broadcast %57 : vector<16x1xf32> to vector<16x64xf32>
    %59 = arith.addf %56, %58 : vector<16x64xf32>
    %60 = tpu.transpose %59, [1, 0] : vector<16x64xf32> -> vector<64x16xf32>
    %c0_32 = arith.constant 0 : index
    %c0_33 = arith.constant 0 : index
    %61 = vector.load %arg10[%c0_32, %c0_33] : memref<64x16xf32, #tpu.memory_space<vmem>>, vector<64x16xf32>
    tpu.vector_store %arg10[%c0_32, %c0_33], %60 {strides = array<i32>} : memref<64x16xf32, #tpu.memory_space<vmem>>, vector<64x16xf32>,
    %62 = tpu.transpose %36, [1, 0] : vector<32x64xf32> -> vector<64x32xf32>
    %c0_34 = arith.constant 0 : index
    %c0_35 = arith.constant 0 : index
    %63 = vector.load %arg11[%c0_34, %c0_35] : memref<64x32xf32, #tpu.memory_space<vmem>>, vector<64x32xf32>
    tpu.vector_store %arg11[%c0_34, %c0_35], %62 {strides = array<i32>} : memref<64x32xf32, #tpu.memory_space<vmem>>, vector<64x32xf32>,
    return
  }
  func.func @transform_0(%arg0: i32) -> (i32, i32) {
    %c0_i32 = arith.constant 0 : i32
    %c0_i32_0 = arith.constant 0 : i32
    return %arg0, %c0_i32 : i32, i32
  }
  func.func @transform_1(%arg0: i32) -> (i32, i32) {
    %c0_i32 = arith.constant 0 : i32
    %c0_i32_0 = arith.constant 0 : i32
    %c0_i32_1 = arith.constant 0 : i32
    return %c0_i32, %c0_i32_0 : i32, i32
  }
  func.func @transform_2(%arg0: i32) -> (i32, i32) {
    %c0_i32 = arith.constant 0 : i32
    %c0_i32_0 = arith.constant 0 : i32
    %c0_i32_1 = arith.constant 0 : i32
    return %c0_i32, %c0_i32_0 : i32, i32
  }
  func.func @transform_3(%arg0: i32) -> (i32, i32) {
    %c0_i32 = arith.constant 0 : i32
    %c0_i32_0 = arith.constant 0 : i32
    %c0_i32_1 = arith.constant 0 : i32
    return %c0_i32, %c0_i32_0 : i32, i32
  }
  func.func @transform_4(%arg0: i32) -> (i32, i32) {
    %c0_i32 = arith.constant 0 : i32
    %c0_i32_0 = arith.constant 0 : i32
    %c0_i32_1 = arith.constant 0 : i32
    return %c0_i32, %c0_i32_0 : i32, i32
  }
  func.func @transform_5(%arg0: i32) -> (i32, i32) {
    %c0_i32 = arith.constant 0 : i32
    %c0_i32_0 = arith.constant 0 : i32
    %c0_i32_1 = arith.constant 0 : i32
    return %c0_i32, %c0_i32_0 : i32, i32
  }
  func.func @transform_6(%arg0: i32) -> (i32, i32) {
    %c0_i32 = arith.constant 0 : i32
    %c0_i32_0 = arith.constant 0 : i32
    %c0_i32_1 = arith.constant 0 : i32
    return %c0_i32, %c0_i32_0 : i32, i32
  }
  func.func @transform_7(%arg0: i32) -> (i32, i32) {
    %c0_i32 = arith.constant 0 : i32
    %c0_i32_0 = arith.constant 0 : i32
    %c0_i32_1 = arith.constant 0 : i32
    return %c0_i32, %c0_i32_0 : i32, i32
  }
  func.func @transform_8(%arg0: i32) -> (i32, i32) {
    %c0_i32 = arith.constant 0 : i32
    %c0_i32_0 = arith.constant 0 : i32
    %c0_i32_1 = arith.constant 0 : i32
    return %c0_i32, %c0_i32_0 : i32, i32
  }
  func.func @transform_9(%arg0: i32) -> (i32, i32) {
    %c0_i32 = arith.constant 0 : i32
    %c0_i32_0 = arith.constant 0 : i32
    return %arg0, %c0_i32 : i32, i32
  }
  func.func @transform_10(%arg0: i32) -> (i32, i32) {
    %c0_i32 = arith.constant 0 : i32
    %c0_i32_0 = arith.constant 0 : i32
    return %arg0, %c0_i32 : i32, i32
  }
}

</mosaic_0001>

<llo_original>
// kernel: causal_estimator_forward.1
$region0: #{causal_estimator_forward.1}
  #allocation0 [shape = 'u32[]', space=smem, size = 0x4, offset = 0x4, fixed_abs, tag = 'smem constant byte address 0x4 - core index']
  #allocation1 [shape = 'u32[144,128]{1,0:T(1,128)}', space=vmem, size = 0x12000, scoped, tag = 'internal scratch']
  %s0 = inlined_call_operand.vmem [shape: f32[64,16], index: 0, kind: input, shape index: {}]
  %s1 = inlined_call_operand.vmem [shape: f32[32,16], index: 1, kind: input, shape index: {}]
  %s2 = inlined_call_operand.vmem [shape: f32[32,1], index: 2, kind: input, shape index: {}]
  %s3 = inlined_call_operand.vmem [shape: f32[32,32], index: 3, kind: input, shape index: {}]
  %s4 = inlined_call_operand.vmem [shape: f32[32,1], index: 4, kind: input, shape index: {}]
  %s5 = inlined_call_operand.vmem [shape: f32[32,32], index: 5, kind: input, shape index: {}]
  %s6 = inlined_call_operand.vmem [shape: f32[32,1], index: 6, kind: input, shape index: {}]
  %s7 = inlined_call_operand.vmem [shape: f32[16,32], index: 7, kind: input, shape index: {}]
  %s8 = inlined_call_operand.vmem [shape: f32[16,1], index: 8, kind: input, shape index: {}]
  %s9 = inlined_call_operand.vmem [shape: f32[64,16], index: 9, kind: output, shape index: {0}]
  %s10 = inlined_call_operand.vmem [shape: f32[64,32], index: 10, kind: output, shape index: {1}]
  %11 = xla_tuple %s9, %s10
  %s12 = sld [smem:[#allocation0]]
  $region54: #{causal_estimator_forward.1} parent=0
    _
  %s14 = ssub.s32 1, %s12
  %s15 = scalar_select 0, %s14, %s12
  // Predicated region
  $region2: #{causal_estimator_forward.1} parent=0 // pred_check
    _
  $region3: #{causal_estimator_forward.1} parent=0 // pred_check_branch
    %17 = sbr.rel (0) target = $region5
  $region4: #{causal_estimator_forward.1} parent=0 // pred_region
    _
  $region5: #{causal_estimator_forward.1} parent=0 // pred_fallthru
    _
  // Predicated region
  $region6: #{causal_estimator_forward.1} parent=0 // pred_check
    _
  $region7: #{causal_estimator_forward.1} parent=0 // pred_check_branch
    %19 = sbr.rel (0) target = $region9
  $region8: #{causal_estimator_forward.1} parent=0 // pred_region
    _
  $region9: #{causal_estimator_forward.1} parent=0 // pred_fallthru
    _
  // Predicated region
  $region10: #{causal_estimator_forward.1} parent=0 // pred_check
    _
  $region11: #{causal_estimator_forward.1} parent=0 // pred_check_branch
    %21 = sbr.rel (0) target = $region13
  $region12: #{causal_estimator_forward.1} parent=0 // pred_region
    _
  $region13: #{causal_estimator_forward.1} parent=0 // pred_fallthru
    _
  // Predicated region
  $region14: #{causal_estimator_forward.1} parent=0 // pred_check
    _
  $region15: #{causal_estimator_forward.1} parent=0 // pred_check_branch
    %23 = sbr.rel (0) target = $region17
  $region16: #{causal_estimator_forward.1} parent=0 // pred_region
    _
  $region17: #{causal_estimator_forward.1} parent=0 // pred_fallthru
    _
  // Predicated region
  $region18: #{causal_estimator_forward.1} parent=0 // pred_check
    _
  $region19: #{causal_estimator_forward.1} parent=0 // pred_check_branch
    %25 = sbr.rel (0) target = $region21
  $region20: #{causal_estimator_forward.1} parent=0 // pred_region
    _
  $region21: #{causal_estimator_forward.1} parent=0 // pred_fallthru
    _
  // Predicated region
  $region22: #{causal_estimator_forward.1} parent=0 // pred_check
    _
  $region23: #{causal_estimator_forward.1} parent=0 // pred_check_branch
    %27 = sbr.rel (0) target = $region25
  $region24: #{causal_estimator_forward.1} parent=0 // pred_region
    _
  $region25: #{causal_estimator_forward.1} parent=0 // pred_fallthru
    _
  // Predicated region
  $region26: #{causal_estimator_forward.1} parent=0 // pred_check
    _
  $region27: #{causal_estimator_forward.1} parent=0 // pred_check_branch
    %29 = sbr.rel (0) target = $region29
  $region28: #{causal_estimator_forward.1} parent=0 // pred_region
    _
  $region29: #{causal_estimator_forward.1} parent=0 // pred_fallthru
    _
  // Predicated region
  $region30: #{causal_estimator_forward.1} parent=0 // pred_check
    _
  $region31: #{causal_estimator_forward.1} parent=0 // pred_check_branch
    %31 = sbr.rel (0) target = $region33
  $region32: #{causal_estimator_forward.1} parent=0 // pred_region
    _
  $region33: #{causal_estimator_forward.1} parent=0 // pred_fallthru
    _
  // Predicated region
  $region34: #{causal_estimator_forward.1} parent=0 // pred_check
    _
  $region35: #{causal_estimator_forward.1} parent=0 // pred_check_branch
    %33 = sbr.rel (0) target = $region37
  $region36: #{causal_estimator_forward.1} parent=0 // pred_region
    _
  $region37: #{causal_estimator_forward.1} parent=0 // pred_fallthru
    _
  %v34 = vld [vmem:[%s0] sm:$0xff]
  %v35 = vld [vmem:[%s0 + $0x8] sm:$0xff]
  %v36 = vld [vmem:[%s0 + $0x10] sm:$0xff]
  %v37 = vld [vmem:[%s0 + $0x18] sm:$0xff]
  %v38 = vld [vmem:[%s0 + $0x20] sm:$0xff]
  %v39 = vld [vmem:[%s0 + $0x28] sm:$0xff]
  %v40 = vld [vmem:[%s0 + $0x30] sm:$0xff]
  %v41 = vld [vmem:[%s0 + $0x38] sm:$0xff]
  %v42 = vld [vmem:[%s1] sm:$0xff]
  %v43 = vld [vmem:[%s1 + $0x8] sm:$0xff]
  %v44 = vld [vmem:[%s1 + $0x10] sm:$0xff]
  %v45 = vld [vmem:[%s1 + $0x18] sm:$0xff]
  %v46 = vld [vmem:[%s2] sm:$0xff]
  %v47 = vld [vmem:[%s2 + $0x8] sm:$0xff]
  %v48 = vld [vmem:[%s2 + $0x10] sm:$0xff]
  %v49 = vld [vmem:[%s2 + $0x18] sm:$0xff]
  %51 = vset.pattern.permute.xlu0 0
  %52 = vperm.xlu0 %51, %v46
  %v53 = vpop.permute.xlu0 %52
  %56 = vset.pattern.permute.xlu0 0
  %57 = vperm.xlu0 %56, %v47
  %v58 = vpop.permute.xlu0 %57
  %61 = vset.pattern.permute.xlu0 0
  %62 = vperm.xlu0 %61, %v48
  %v63 = vpop.permute.xlu0 %62
  %66 = vset.pattern.permute.xlu0 0
  %67 = vperm.xlu0 %66, %v49
  %v68 = vpop.permute.xlu0 %67
  %vm70 = vcmask 130048
  %v72 = vsel %vm70, %v42, 0
  %v75 = vsel %vm70, %v43, 0
  %v78 = vsel %vm70, %v44, 0
  %v81 = vsel %vm70, %v45, 0
  %v84 = vsel %vm70, %v34, 0
  %v87 = vsel %vm70, %v35, 0
  %v90 = vsel %vm70, %v36, 0
  %v93 = vsel %vm70, %v37, 0
  %v96 = vsel %vm70, %v38, 0
  %v99 = vsel %vm70, %v39, 0
  %v102 = vsel %vm70, %v40, 0
  %v105 = vsel %vm70, %v41, 0
  %107 = vmatprep.subr.mxu0 0.0
  %108 = vmatpush1.xpose.msra.mxu0 0.0
  %109 = vmatprep.subr.mxu0 0.0
  %110 = vmatpush1.xpose.msra.mxu0 0.0
  %111 = vmatprep.subr.mxu0 0.0
  %112 = vmatpush1.xpose.msra.mxu0 0.0
  %113 = vmatprep.subr.mxu0 0.0
  %114 = vmatpush1.xpose.msra.mxu0 0.0
  %115 = vmatprep.subr.mxu0 0.0
  %116 = vmatpush1.xpose.msra.mxu0 0.0
  %117 = vmatprep.subr.mxu0 0.0
  %118 = vmatpush1.xpose.msra.mxu0 0.0
  %119 = vmatprep.subr.mxu0 0.0
  %120 = vmatpush1.xpose.msra.mxu0 0.0
  %121 = vmatprep.subr.mxu0 0.0
  %122 = vmatpush1.xpose.msra.mxu0 0.0
  %123 = vmatprep.subr.mxu0 0.0
  %v124 = vand.u32 %v105, 4294901760
  %125 = vmatpush1.xpose.msra.mxu0 %v124
  %126 = vmatprep.subr.mxu0 0.0
  %v127 = vand.u32 %v102, 4294901760
  %128 = vmatpush1.xpose.msra.mxu0 %v127
  %129 = vmatprep.subr.mxu0 0.0
  %v130 = vand.u32 %v99, 4294901760
  %131 = vmatpush1.xpose.msra.mxu0 %v130
  %132 = vmatprep.subr.mxu0 0.0
  %v133 = vand.u32 %v96, 4294901760
  %134 = vmatpush1.xpose.msra.mxu0 %v133
  %135 = vmatprep.subr.mxu0 0.0
  %v136 = vand.u32 %v93, 4294901760
  %137 = vmatpush1.xpose.msra.mxu0 %v136
  %138 = vmatprep.subr.mxu0 0.0
  %v139 = vand.u32 %v90, 4294901760
  %140 = vmatpush1.xpose.msra.mxu0 %v139
  %141 = vmatprep.subr.mxu0 0.0
  %v142 = vand.u32 %v87, 4294901760
  %143 = vmatpush1.xpose.msra.mxu0 %v142
  %144 = vmatprep.subr.mxu0 0.0
  %v145 = vand.u32 %v84, 4294901760
  %146 = vmatpush1.xpose.msra.mxu0 %v145
  %147 = vmatprep.subr.mxu0 0.0
  %148 = vmatpush2.xpose.msra.mxu0 0.0
  %149 = vmatprep.subr.mxu0 0.0
  %150 = vmatpush2.xpose.msra.mxu0 0.0
  %151 = vmatprep.subr.mxu0 0.0
  %152 = vmatpush2.xpose.msra.mxu0 0.0
  %153 = vmatprep.subr.mxu0 0.0
  %154 = vmatpush2.xpose.msra.mxu0 0.0
  %155 = vmatprep.subr.mxu0 0.0
  %156 = vmatpush2.xpose.msra.mxu0 0.0
  %157 = vmatprep.subr.mxu0 0.0
  %158 = vmatpush2.xpose.msra.mxu0 0.0
  %159 = vmatprep.subr.mxu0 0.0
  %160 = vmatpush2.xpose.msra.mxu0 0.0
  %161 = vmatprep.subr.mxu0 0.0
  %162 = vmatpush2.xpose.msra.mxu0 0.0
  %163 = vmatprep.subr.mxu0 0.0
  %164 = vmatpush2.xpose.msra.mxu0 0.0
  %165 = vmatprep.subr.mxu0 0.0
  %166 = vmatpush2.xpose.msra.mxu0 0.0
  %167 = vmatprep.subr.mxu0 0.0
  %168 = vmatpush2.xpose.msra.mxu0 0.0
  %169 = vmatprep.subr.mxu0 0.0
  %170 = vmatpush2.xpose.msra.mxu0 0.0
  %171 = vmatprep.subr.mxu0 0.0
  %172 = vmatpush2.xpose.msra.mxu0 0.0
  %173 = vmatprep.subr.mxu0 0.0
  %174 = vmatpush2.xpose.msra.mxu0 0.0
  %175 = vmatprep.subr.mxu0 0.0
  %176 = vmatpush2.xpose.msra.mxu0 0.0
  %177 = vmatprep.subr.mxu0 0.0
  %178 = vmatpush2.xpose.msra.mxu0 0.0
  %179 = vmatprep.mubr.f32.mxu0 0.0
  %v180 = vand.u32 %v72, 4294901760
  %v181 = vsub.f32 %v72, %v180
  %v182 = vand.u32 %v181, 4294901760
  %v183 = vsub.f32 %v181, %v182
  %v184 = vand.u32 %v183, 4294901760
  %185 = vmatmul.mubr.f32.gmra.mxu0 %v184
  %v186 = vpop.f32.mrf.mxu0
  %v187 = vadd.f32 %v53, %v186
  %v188 = vpop.f32.mrf.mxu0
  %189 = vmatprep.mubr.f32.mxu0 0.0
  %v190 = vand.u32 %v75, 4294901760
  %v191 = vsub.f32 %v75, %v190
  %v192 = vand.u32 %v191, 4294901760
  %v193 = vsub.f32 %v191, %v192
  %v194 = vand.u32 %v193, 4294901760
  %195 = vmatmul.mubr.f32.gmra.mxu0 %v194
  %v196 = vpop.f32.mrf.mxu0
  %v197 = vadd.f32 %v58, %v196
  %v198 = vpop.f32.mrf.mxu0
  %199 = vmatprep.mubr.f32.mxu0 0.0
  %v200 = vand.u32 %v78, 4294901760
  %v201 = vsub.f32 %v78, %v200
  %v202 = vand.u32 %v201, 4294901760
  %v203 = vsub.f32 %v201, %v202
  %v204 = vand.u32 %v203, 4294901760
  %205 = vmatmul.mubr.f32.gmra.mxu0 %v204
  %v206 = vpop.f32.mrf.mxu0
  %v207 = vadd.f32 %v63, %v206
  %v208 = vpop.f32.mrf.mxu0
  %209 = vmatprep.mubr.f32.mxu0 0.0
  %v210 = vand.u32 %v81, 4294901760
  %v211 = vsub.f32 %v81, %v210
  %v212 = vand.u32 %v211, 4294901760
  %v213 = vsub.f32 %v211, %v212
  %v214 = vand.u32 %v213, 4294901760
  %215 = vmatmul.mubr.f32.gmra.mxu0 %v214
  %v216 = vpop.f32.mrf.mxu0
  %v217 = vadd.f32 %v68, %v216
  %v218 = vpop.f32.mrf.mxu0
  %219 = vdwg.mxu0
  %220 = vmatprep.subr.mxu0 0.0
  %221 = vmatpush1.xpose.msra.mxu0 0.0
  %222 = vmatprep.subr.mxu0 0.0
  %223 = vmatpush1.xpose.msra.mxu0 0.0
  %224 = vmatprep.subr.mxu0 0.0
  %225 = vmatpush1.xpose.msra.mxu0 0.0
  %226 = vmatprep.subr.mxu0 0.0
  %227 = vmatpush1.xpose.msra.mxu0 0.0
  %228 = vmatprep.subr.mxu0 0.0
  %229 = vmatpush1.xpose.msra.mxu0 0.0
  %230 = vmatprep.subr.mxu0 0.0
  %231 = vmatpush1.xpose.msra.mxu0 0.0
  %232 = vmatprep.subr.mxu0 0.0
  %233 = vmatpush1.xpose.msra.mxu0 0.0
  %234 = vmatprep.subr.mxu0 0.0
  %235 = vmatpush1.xpose.msra.mxu0 0.0
  %236 = vmatprep.subr.mxu0 0.0
  %v237 = vand.u32 %v105, 4294901760
  %v238 = vsub.f32 %v105, %v237
  %v239 = vand.u32 %v238, 4294901760
  %v240 = vsub.f32 %v238, %v239
  %v241 = vand.u32 %v240, 4294901760
  %242 = vmatpush1.xpose.msra.mxu0 %v241
  %243 = vmatprep.subr.mxu0 0.0
  %v244 = vand.u32 %v102, 4294901760
  %v245 = vsub.f32 %v102, %v244
  %v246 = vand.u32 %v245, 4294901760
  %v247 = vsub.f32 %v245, %v246
  %v248 = vand.u32 %v247, 4294901760
  %249 = vmatpush1.xpose.msra.mxu0 %v248
  %250 = vmatprep.subr.mxu0 0.0
  %v251 = vand.u32 %v99, 4294901760
  %v252 = vsub.f32 %v99, %v251
  %v253 = vand.u32 %v252, 4294901760
  %v254 = vsub.f32 %v252, %v253
  %v255 = vand.u32 %v254, 4294901760
  %256 = vmatpush1.xpose.msra.mxu0 %v255
  %257 = vmatprep.subr.mxu0 0.0
  %v258 = vand.u32 %v96, 4294901760
  %v259 = vsub.f32 %v96, %v258
  %v260 = vand.u32 %v259, 4294901760
  %v261 = vsub.f32 %v259, %v260
  %v262 = vand.u32 %v261, 4294901760
  %263 = vmatpush1.xpose.msra.mxu0 %v262
  %264 = vmatprep.subr.mxu0 0.0
  %v265 = vand.u32 %v93, 4294901760
  %v266 = vsub.f32 %v93, %v265
  %v267 = vand.u32 %v266, 4294901760
  %v268 = vsub.f32 %v266, %v267
  %v269 = vand.u32 %v268, 4294901760
  %270 = vmatpush1.xpose.msra.mxu0 %v269
  %271 = vmatprep.subr.mxu0 0.0
  %v272 = vand.u32 %v90, 4294901760
  %v273 = vsub.f32 %v90, %v272
  %v274 = vand.u32 %v273, 4294901760
  %v275 = vsub.f32 %v273, %v274
  %v276 = vand.u32 %v275, 4294901760
  %277 = vmatpush1.xpose.msra.mxu0 %v276
  %278 = vmatprep.subr.mxu0 0.0
  %v279 = vand.u32 %v87, 4294901760
  %v280 = vsub.f32 %v87, %v279
  %v281 = vand.u32 %v280, 4294901760
  %v282 = vsub.f32 %v280, %v281
  %v283 = vand.u32 %v282, 4294901760
  %284 = vmatpush1.xpose.msra.mxu0 %v283
  %285 = vmatprep.subr.mxu0 0.0
  %v286 = vand.u32 %v84, 4294901760
  %v287 = vsub.f32 %v84, %v286
  %v288 = vand.u32 %v287, 4294901760
  %v289 = vsub.f32 %v287, %v288
  %v290 = vand.u32 %v289, 4294901760
  %291 = vmatpush1.xpose.msra.mxu0 %v290
  %292 = vmatprep.subr.mxu0 0.0
  %293 = vmatpush2.xpose.msra.mxu0 0.0
  %294 = vmatprep.subr.mxu0 0.0
  %295 = vmatpush2.xpose.msra.mxu0 0.0
  %296 = vmatprep.subr.mxu0 0.0
  %297 = vmatpush2.xpose.msra.mxu0 0.0
  %298 = vmatprep.subr.mxu0 0.0
  %299 = vmatpush2.xpose.msra.mxu0 0.0
  %300 = vmatprep.subr.mxu0 0.0
  %301 = vmatpush2.xpose.msra.mxu0 0.0
  %302 = vmatprep.subr.mxu0 0.0
  %303 = vmatpush2.xpose.msra.mxu0 0.0
  %304 = vmatprep.subr.mxu0 0.0
  %305 = vmatpush2.xpose.msra.mxu0 0.0
  %306 = vmatprep.subr.mxu0 0.0
  %307 = vmatpush2.xpose.msra.mxu0 0.0
  %308 = vmatprep.subr.mxu0 0.0
  %309 = vmatpush2.xpose.msra.mxu0 0.0
  %310 = vmatprep.subr.mxu0 0.0
  %311 = vmatpush2.xpose.msra.mxu0 0.0
  %312 = vmatprep.subr.mxu0 0.0
  %313 = vmatpush2.xpose.msra.mxu0 0.0
  %314 = vmatprep.subr.mxu0 0.0
  %315 = vmatpush2.xpose.msra.mxu0 0.0
  %316 = vmatprep.subr.mxu0 0.0
  %317 = vmatpush2.xpose.msra.mxu0 0.0
  %318 = vmatprep.subr.mxu0 0.0
  %319 = vmatpush2.xpose.msra.mxu0 0.0
  %320 = vmatprep.subr.mxu0 0.0
  %321 = vmatpush2.xpose.msra.mxu0 0.0
  %322 = vmatprep.subr.mxu0 0.0
  %323 = vmatpush2.xpose.msra.mxu0 0.0
  %324 = vmatprep.mubr.f32.mxu0 0.0
  %v325 = vand.u32 %v72, 4294901760
  %326 = vmatmul.mubr.f32.gmra.mxu0 %v325
  %v327 = vpop.f32.mrf.mxu0
  %v328 = vadd.f32 %v187, %v327
  %v329 = vpop.f32.mrf.mxu0
  %330 = vmatprep.mubr.f32.mxu0 0.0
  %v331 = vand.u32 %v75, 4294901760
  %332 = vmatmul.mubr.f32.gmra.mxu0 %v331
  %v333 = vpop.f32.mrf.mxu0
  %v334 = vadd.f32 %v197, %v333
  %v335 = vpop.f32.mrf.mxu0
  %336 = vmatprep.mubr.f32.mxu0 0.0
  %v337 = vand.u32 %v78, 4294901760
  %338 = vmatmul.mubr.f32.gmra.mxu0 %v337
  %v339 = vpop.f32.mrf.mxu0
  %v340 = vadd.f32 %v207, %v339
  %v341 = vpop.f32.mrf.mxu0
  %342 = vmatprep.mubr.f32.mxu0 0.0
  %v343 = vand.u32 %v81, 4294901760
  %344 = vmatmul.mubr.f32.gmra.mxu0 %v343
  %v345 = vpop.f32.mrf.mxu0
  %v346 = vadd.f32 %v217, %v345
  %v347 = vpop.f32.mrf.mxu0
  %348 = vdwg.mxu0
  %349 = vmatprep.subr.mxu0 0.0
  %350 = vmatpush1.xpose.msra.mxu0 0.0
  %351 = vmatprep.subr.mxu0 0.0
  %352 = vmatpush1.xpose.msra.mxu0 0.0
  %353 = vmatprep.subr.mxu0 0.0
  %354 = vmatpush1.xpose.msra.mxu0 0.0
  %355 = vmatprep.subr.mxu0 0.0
  %356 = vmatpush1.xpose.msra.mxu0 0.0
  %357 = vmatprep.subr.mxu0 0.0
  %358 = vmatpush1.xpose.msra.mxu0 0.0
  %359 = vmatprep.subr.mxu0 0.0
  %360 = vmatpush1.xpose.msra.mxu0 0.0
  %361 = vmatprep.subr.mxu0 0.0
  %362 = vmatpush1.xpose.msra.mxu0 0.0
  %363 = vmatprep.subr.mxu0 0.0
  %364 = vmatpush1.xpose.msra.mxu0 0.0
  %365 = vmatprep.subr.mxu0 0.0
  %v366 = vand.u32 %v105, 4294901760
  %v367 = vsub.f32 %v105, %v366
  %368 = vmatpush1.xpose.msra.mxu0 %v367
  %369 = vmatprep.subr.mxu0 0.0
  %v370 = vand.u32 %v102, 4294901760
  %v371 = vsub.f32 %v102, %v370
  %372 = vmatpush1.xpose.msra.mxu0 %v371
  %373 = vmatprep.subr.mxu0 0.0
  %v374 = vand.u32 %v99, 4294901760
  %v375 = vsub.f32 %v99, %v374
  %376 = vmatpush1.xpose.msra.mxu0 %v375
  %377 = vmatprep.subr.mxu0 0.0
  %v378 = vand.u32 %v96, 4294901760
  %v379 = vsub.f32 %v96, %v378
  %380 = vmatpush1.xpose.msra.mxu0 %v379
  %381 = vmatprep.subr.mxu0 0.0
  %v382 = vand.u32 %v93, 4294901760
  %v383 = vsub.f32 %v93, %v382
  %384 = vmatpush1.xpose.msra.mxu0 %v383
  %385 = vmatprep.subr.mxu0 0.0
  %v386 = vand.u32 %v90, 4294901760
  %v387 = vsub.f32 %v90, %v386
  %388 = vmatpush1.xpose.msra.mxu0 %v387
  %389 = vmatprep.subr.mxu0 0.0
  %v390 = vand.u32 %v87, 4294901760
  %v391 = vsub.f32 %v87, %v390
  %392 = vmatpush1.xpose.msra.mxu0 %v391
  %393 = vmatprep.subr.mxu0 0.0
  %v394 = vand.u32 %v84, 4294901760
  %v395 = vsub.f32 %v84, %v394
  %396 = vmatpush1.xpose.msra.mxu0 %v395
  %397 = vmatprep.subr.mxu0 0.0
  %398 = vmatpush2.xpose.msra.mxu0 0.0
  %399 = vmatprep.subr.mxu0 0.0
  %400 = vmatpush2.xpose.msra.mxu0 0.0
  %401 = vmatprep.subr.mxu0 0.0
  %402 = vmatpush2.xpose.msra.mxu0 0.0
  %403 = vmatprep.subr.mxu0 0.0
  %404 = vmatpush2.xpose.msra.mxu0 0.0
  %405 = vmatprep.subr.mxu0 0.0
  %406 = vmatpush2.xpose.msra.mxu0 0.0
  %407 = vmatprep.subr.mxu0 0.0
  %408 = vmatpush2.xpose.msra.mxu0 0.0
  %409 = vmatprep.subr.mxu0 0.0
  %410 = vmatpush2.xpose.msra.mxu0 0.0
  %411 = vmatprep.subr.mxu0 0.0
  %412 = vmatpush2.xpose.msra.mxu0 0.0
  %413 = vmatprep.subr.mxu0 0.0
  %414 = vmatpush2.xpose.msra.mxu0 0.0
  %415 = vmatprep.subr.mxu0 0.0
  %416 = vmatpush2.xpose.msra.mxu0 0.0
  %417 = vmatprep.subr.mxu0 0.0
  %418 = vmatpush2.xpose.msra.mxu0 0.0
  %419 = vmatprep.subr.mxu0 0.0
  %420 = vmatpush2.xpose.msra.mxu0 0.0
  %421 = vmatprep.subr.mxu0 0.0
  %422 = vmatpush2.xpose.msra.mxu0 0.0
  %423 = vmatprep.subr.mxu0 0.0
  %424 = vmatpush2.xpose.msra.mxu0 0.0
  %425 = vmatprep.subr.mxu0 0.0
  %426 = vmatpush2.xpose.msra.mxu0 0.0
  %427 = vmatprep.subr.mxu0 0.0
  %428 = vmatpush2.xpose.msra.mxu0 0.0
  %429 = vmatprep.mubr.f32.mxu0 0.0
  %v430 = vand.u32 %v72, 4294901760
  %v431 = vsub.f32 %v72, %v430
  %432 = vmatmul.mubr.f32.gmra.mxu0 %v431
  %v433 = vpop.f32.mrf.mxu0
  %v434 = vadd.f32 %v328, %v433
  %v435 = vpop.f32.mrf.mxu0
  %436 = vmatprep.mubr.f32.mxu0 0.0
  %v437 = vand.u32 %v75, 4294901760
  %v438 = vsub.f32 %v75, %v437
  %439 = vmatmul.mubr.f32.gmra.mxu0 %v438
  %v440 = vpop.f32.mrf.mxu0
  %v441 = vadd.f32 %v334, %v440
  %v442 = vpop.f32.mrf.mxu0
  %443 = vmatprep.mubr.f32.mxu0 0.0
  %v444 = vand.u32 %v78, 4294901760
  %v445 = vsub.f32 %v78, %v444
  %446 = vmatmul.mubr.f32.gmra.mxu0 %v445
  %v447 = vpop.f32.mrf.mxu0
  %v448 = vadd.f32 %v340, %v447
  %v449 = vpop.f32.mrf.mxu0
  %450 = vmatprep.mubr.f32.mxu0 0.0
  %v451 = vand.u32 %v81, 4294901760
  %v452 = vsub.f32 %v81, %v451
  %453 = vmatmul.mubr.f32.gmra.mxu0 %v452
  %v454 = vpop.f32.mrf.mxu0
  %v455 = vadd.f32 %v346, %v454
  %v456 = vpop.f32.mrf.mxu0
  %457 = vdwg.mxu0
  %458 = vmatprep.subr.mxu0 0.0
  %459 = vmatpush1.xpose.msra.mxu0 0.0
  %460 = vmatprep.subr.mxu0 0.0
  %461 = vmatpush1.xpose.msra.mxu0 0.0
  %462 = vmatprep.subr.mxu0 0.0
  %463 = vmatpush1.xpose.msra.mxu0 0.0
  %464 = vmatprep.subr.mxu0 0.0
  %465 = vmatpush1.xpose.msra.mxu0 0.0
  %466 = vmatprep.subr.mxu0 0.0
  %467 = vmatpush1.xpose.msra.mxu0 0.0
  %468 = vmatprep.subr.mxu0 0.0
  %469 = vmatpush1.xpose.msra.mxu0 0.0
  %470 = vmatprep.subr.mxu0 0.0
  %471 = vmatpush1.xpose.msra.mxu0 0.0
  %472 = vmatprep.subr.mxu0 0.0
  %473 = vmatpush1.xpose.msra.mxu0 0.0
  %474 = vmatprep.subr.mxu0 0.0
  %v475 = vand.u32 %v105, 4294901760
  %476 = vmatpush1.xpose.msra.mxu0 %v475
  %477 = vmatprep.subr.mxu0 0.0
  %v478 = vand.u32 %v102, 4294901760
  %479 = vmatpush1.xpose.msra.mxu0 %v478
  %480 = vmatprep.subr.mxu0 0.0
  %v481 = vand.u32 %v99, 4294901760
  %482 = vmatpush1.xpose.msra.mxu0 %v481
  %483 = vmatprep.subr.mxu0 0.0
  %v484 = vand.u32 %v96, 4294901760
  %485 = vmatpush1.xpose.msra.mxu0 %v484
  %486 = vmatprep.subr.mxu0 0.0
  %v487 = vand.u32 %v93, 4294901760
  %488 = vmatpush1.xpose.msra.mxu0 %v487
  %489 = vmatprep.subr.mxu0 0.0
  %v490 = vand.u32 %v90, 4294901760
  %491 = vmatpush1.xpose.msra.mxu0 %v490
  %492 = vmatprep.subr.mxu0 0.0
  %v493 = vand.u32 %v87, 4294901760
  %494 = vmatpush1.xpose.msra.mxu0 %v493
  %495 = vmatprep.subr.mxu0 0.0
  %v496 = vand.u32 %v84, 4294901760
  %497 = vmatpush1.xpose.msra.mxu0 %v496
  %498 = vmatprep.subr.mxu0 0.0
  %499 = vmatpush2.xpose.msra.mxu0 0.0
  %500 = vmatprep.subr.mxu0 0.0
  %501 = vmatpush2.xpose.msra.mxu0 0.0
  %502 = vmatprep.subr.mxu0 0.0
  %503 = vmatpush2.xpose.msra.mxu0 0.0
  %504 = vmatprep.subr.mxu0 0.0
  %505 = vmatpush2.xpose.msra.mxu0 0.0
  %506 = vmatprep.subr.mxu0 0.0
  %507 = vmatpush2.xpose.msra.mxu0 0.0
  %508 = vmatprep.subr.mxu0 0.0
  %509 = vmatpush2.xpose.msra.mxu0 0.0
  %510 = vmatprep.subr.mxu0 0.0
  %511 = vmatpush2.xpose.msra.mxu0 0.0
  %512 = vmatprep.subr.mxu0 0.0
  %513 = vmatpush2.xpose.msra.mxu0 0.0
  %514 = vmatprep.subr.mxu0 0.0
  %515 = vmatpush2.xpose.msra.mxu0 0.0
  %516 = vmatprep.subr.mxu0 0.0
  %517 = vmatpush2.xpose.msra.mxu0 0.0
  %518 = vmatprep.subr.mxu0 0.0
  %519 = vmatpush2.xpose.msra.mxu0 0.0
  %520 = vmatprep.subr.mxu0 0.0
  %521 = vmatpush2.xpose.msra.mxu0 0.0
  %522 = vmatprep.subr.mxu0 0.0
  %523 = vmatpush2.xpose.msra.mxu0 0.0
  %524 = vmatprep.subr.mxu0 0.0
  %525 = vmatpush2.xpose.msra.mxu0 0.0
  %526 = vmatprep.subr.mxu0 0.0
  %527 = vmatpush2.xpose.msra.mxu0 0.0
  %528 = vmatprep.subr.mxu0 0.0
  %529 = vmatpush2.xpose.msra.mxu0 0.0
  %530 = vmatprep.mubr.f32.mxu0 0.0
  %v531 = vand.u32 %v72, 4294901760
  %v532 = vsub.f32 %v72, %v531
  %v533 = vand.u32 %v532, 4294901760
  %534 = vmatmul.mubr.f32.gmra.mxu0 %v533
  %v535 = vpop.f32.mrf.mxu0
  %v536 = vadd.f32 %v434, %v535
  %v537 = vpop.f32.mrf.mxu0
  %538 = vmatprep.mubr.f32.mxu0 0.0
  %v539 = vand.u32 %v75, 4294901760
  %v540 = vsub.f32 %v75, %v539
  %v541 = vand.u32 %v540, 4294901760
  %542 = vmatmul.mubr.f32.gmra.mxu0 %v541
  %v543 = vpop.f32.mrf.mxu0
  %v544 = vadd.f32 %v441, %v543
  %v545 = vpop.f32.mrf.mxu0
  %546 = vmatprep.mubr.f32.mxu0 0.0
  %v547 = vand.u32 %v78, 4294901760
  %v548 = vsub.f32 %v78, %v547
  %v549 = vand.u32 %v548, 4294901760
  %550 = vmatmul.mubr.f32.gmra.mxu0 %v549
  %v551 = vpop.f32.mrf.mxu0
  %v552 = vadd.f32 %v448, %v551
  %v553 = vpop.f32.mrf.mxu0
  %554 = vmatprep.mubr.f32.mxu0 0.0
  %v555 = vand.u32 %v81, 4294901760
  %v556 = vsub.f32 %v81, %v555
  %v557 = vand.u32 %v556, 4294901760
  %558 = vmatmul.mubr.f32.gmra.mxu0 %v557
  %v559 = vpop.f32.mrf.mxu0
  %v560 = vadd.f32 %v455, %v559
  %v561 = vpop.f32.mrf.mxu0
  %562 = vdwg.mxu0
  %563 = vmatprep.subr.mxu0 0.0
  %564 = vmatpush1.xpose.msra.mxu0 0.0
  %565 = vmatprep.subr.mxu0 0.0
  %566 = vmatpush1.xpose.msra.mxu0 0.0
  %567 = vmatprep.subr.mxu0 0.0
  %568 = vmatpush1.xpose.msra.mxu0 0.0
  %569 = vmatprep.subr.mxu0 0.0
  %570 = vmatpush1.xpose.msra.mxu0 0.0
  %571 = vmatprep.subr.mxu0 0.0
  %572 = vmatpush1.xpose.msra.mxu0 0.0
  %573 = vmatprep.subr.mxu0 0.0
  %574 = vmatpush1.xpose.msra.mxu0 0.0
  %575 = vmatprep.subr.mxu0 0.0
  %576 = vmatpush1.xpose.msra.mxu0 0.0
  %577 = vmatprep.subr.mxu0 0.0
  %578 = vmatpush1.xpose.msra.mxu0 0.0
  %579 = vmatprep.subr.mxu0 0.0
  %v580 = vand.u32 %v105, 4294901760
  %v581 = vsub.f32 %v105, %v580
  %v582 = vand.u32 %v581, 4294901760
  %583 = vmatpush1.xpose.msra.mxu0 %v582
  %584 = vmatprep.subr.mxu0 0.0
  %v585 = vand.u32 %v102, 4294901760
  %v586 = vsub.f32 %v102, %v585
  %v587 = vand.u32 %v586, 4294901760
  %588 = vmatpush1.xpose.msra.mxu0 %v587
  %589 = vmatprep.subr.mxu0 0.0
  %v590 = vand.u32 %v99, 4294901760
  %v591 = vsub.f32 %v99, %v590
  %v592 = vand.u32 %v591, 4294901760
  %593 = vmatpush1.xpose.msra.mxu0 %v592
  %594 = vmatprep.subr.mxu0 0.0
  %v595 = vand.u32 %v96, 4294901760
  %v596 = vsub.f32 %v96, %v595
  %v597 = vand.u32 %v596, 4294901760
  %598 = vmatpush1.xpose.msra.mxu0 %v597
  %599 = vmatprep.subr.mxu0 0.0
  %v600 = vand.u32 %v93, 4294901760
  %v601 = vsub.f32 %v93, %v600
  %v602 = vand.u32 %v601, 4294901760
  %603 = vmatpush1.xpose.msra.mxu0 %v602
  %604 = vmatprep.subr.mxu0 0.0
  %v605 = vand.u32 %v90, 4294901760
  %v606 = vsub.f32 %v90, %v605
  %v607 = vand.u32 %v606, 4294901760
  %608 = vmatpush1.xpose.msra.mxu0 %v607
  %609 = vmatprep.subr.mxu0 0.0
  %v610 = vand.u32 %v87, 4294901760
  %v611 = vsub.f32 %v87, %v610
  %v612 = vand.u32 %v611, 4294901760
  %613 = vmatpush1.xpose.msra.mxu0 %v612
  %614 = vmatprep.subr.mxu0 0.0
  %v615 = vand.u32 %v84, 4294901760
  %v616 = vsub.f32 %v84, %v615
  %v617 = vand.u32 %v616, 4294901760
  %618 = vmatpush1.xpose.msra.mxu0 %v617
  %619 = vmatprep.subr.mxu0 0.0
  %620 = vmatpush2.xpose.msra.mxu0 0.0
  %621 = vmatprep.subr.mxu0 0.0
  %622 = vmatpush2.xpose.msra.mxu0 0.0
  %623 = vmatprep.subr.mxu0 0.0
  %624 = vmatpush2.xpose.msra.mxu0 0.0
  %625 = vmatprep.subr.mxu0 0.0
  %626 = vmatpush2.xpose.msra.mxu0 0.0
  %627 = vmatprep.subr.mxu0 0.0
  %628 = vmatpush2.xpose.msra.mxu0 0.0
  %629 = vmatprep.subr.mxu0 0.0
  %630 = vmatpush2.xpose.msra.mxu0 0.0
  %631 = vmatprep.subr.mxu0 0.0
  %632 = vmatpush2.xpose.msra.mxu0 0.0
  %633 = vmatprep.subr.mxu0 0.0
  %634 = vmatpush2.xpose.msra.mxu0 0.0
  %635 = vmatprep.subr.mxu0 0.0
  %636 = vmatpush2.xpose.msra.mxu0 0.0
  %637 = vmatprep.subr.mxu0 0.0
  %638 = vmatpush2.xpose.msra.mxu0 0.0
  %639 = vmatprep.subr.mxu0 0.0
  %640 = vmatpush2.xpose.msra.mxu0 0.0
  %641 = vmatprep.subr.mxu0 0.0
  %642 = vmatpush2.xpose.msra.mxu0 0.0
  %643 = vmatprep.subr.mxu0 0.0
  %644 = vmatpush2.xpose.msra.mxu0 0.0
  %645 = vmatprep.subr.mxu0 0.0
  %646 = vmatpush2.xpose.msra.mxu0 0.0
  %647 = vmatprep.subr.mxu0 0.0
  %648 = vmatpush2.xpose.msra.mxu0 0.0
  %649 = vmatprep.subr.mxu0 0.0
  %650 = vmatpush2.xpose.msra.mxu0 0.0
  %651 = vmatprep.mubr.f32.mxu0 0.0
  %v652 = vand.u32 %v72, 4294901760
  %653 = vmatmul.mubr.f32.gmra.mxu0 %v652
  %v654 = vpop.f32.mrf.mxu0
  %v655 = vadd.f32 %v536, %v654
  %v656 = vpop.f32.mrf.mxu0
  %657 = vmatprep.mubr.f32.mxu0 0.0
  %v658 = vand.u32 %v75, 4294901760
  %659 = vmatmul.mubr.f32.gmra.mxu0 %v658
  %v660 = vpop.f32.mrf.mxu0
  %v661 = vadd.f32 %v544, %v660
  %v662 = vpop.f32.mrf.mxu0
  %663 = vmatprep.mubr.f32.mxu0 0.0
  %v664 = vand.u32 %v78, 4294901760
  %665 = vmatmul.mubr.f32.gmra.mxu0 %v664
  %v666 = vpop.f32.mrf.mxu0
  %v667 = vadd.f32 %v552, %v666
  %v668 = vpop.f32.mrf.mxu0
  %669 = vmatprep.mubr.f32.mxu0 0.0
  %v670 = vand.u32 %v81, 4294901760
  %671 = vmatmul.mubr.f32.gmra.mxu0 %v670
  %v672 = vpop.f32.mrf.mxu0
  %v673 = vadd.f32 %v560, %v672
  %v674 = vpop.f32.mrf.mxu0
  %675 = vdwg.mxu0
  %676 = vmatprep.subr.mxu0 0.0
  %677 = vmatpush1.xpose.msra.mxu0 0.0
  %678 = vmatprep.subr.mxu0 0.0
  %679 = vmatpush1.xpose.msra.mxu0 0.0
  %680 = vmatprep.subr.mxu0 0.0
  %681 = vmatpush1.xpose.msra.mxu0 0.0
  %682 = vmatprep.subr.mxu0 0.0
  %683 = vmatpush1.xpose.msra.mxu0 0.0
  %684 = vmatprep.subr.mxu0 0.0
  %685 = vmatpush1.xpose.msra.mxu0 0.0
  %686 = vmatprep.subr.mxu0 0.0
  %687 = vmatpush1.xpose.msra.mxu0 0.0
  %688 = vmatprep.subr.mxu0 0.0
  %689 = vmatpush1.xpose.msra.mxu0 0.0
  %690 = vmatprep.subr.mxu0 0.0
  %691 = vmatpush1.xpose.msra.mxu0 0.0
  %692 = vmatprep.subr.mxu0 0.0
  %v693 = vand.u32 %v105, 4294901760
  %694 = vmatpush1.xpose.msra.mxu0 %v693
  %695 = vmatprep.subr.mxu0 0.0
  %v696 = vand.u32 %v102, 4294901760
  %697 = vmatpush1.xpose.msra.mxu0 %v696
  %698 = vmatprep.subr.mxu0 0.0
  %v699 = vand.u32 %v99, 4294901760
  %700 = vmatpush1.xpose.msra.mxu0 %v699
  %701 = vmatprep.subr.mxu0 0.0
  %v702 = vand.u32 %v96, 4294901760
  %703 = vmatpush1.xpose.msra.mxu0 %v702
  %704 = vmatprep.subr.mxu0 0.0
  %v705 = vand.u32 %v93, 4294901760
  %706 = vmatpush1.xpose.msra.mxu0 %v705
  %707 = vmatprep.subr.mxu0 0.0
  %v708 = vand.u32 %v90, 4294901760
  %709 = vmatpush1.xpose.msra.mxu0 %v708
  %710 = vmatprep.subr.mxu0 0.0
  %v711 = vand.u32 %v87, 4294901760
  %712 = vmatpush1.xpose.msra.mxu0 %v711
  %713 = vmatprep.subr.mxu0 0.0
  %v714 = vand.u32 %v84, 4294901760
  %715 = vmatpush1.xpose.msra.mxu0 %v714
  %716 = vmatprep.subr.mxu0 0.0
  %717 = vmatpush2.xpose.msra.mxu0 0.0
  %718 = vmatprep.subr.mxu0 0.0
  %719 = vmatpush2.xpose.msra.mxu0 0.0
  %720 = vmatprep.subr.mxu0 0.0
  %721 = vmatpush2.xpose.msra.mxu0 0.0
  %722 = vmatprep.subr.mxu0 0.0
  %723 = vmatpush2.xpose.msra.mxu0 0.0
  %724 = vmatprep.subr.mxu0 0.0
  %725 = vmatpush2.xpose.msra.mxu0 0.0
  %726 = vmatprep.subr.mxu0 0.0
  %727 = vmatpush2.xpose.msra.mxu0 0.0
  %728 = vmatprep.subr.mxu0 0.0
  %729 = vmatpush2.xpose.msra.mxu0 0.0
  %730 = vmatprep.subr.mxu0 0.0
  %731 = vmatpush2.xpose.msra.mxu0 0.0
  %732 = vmatprep.subr.mxu0 0.0
  %733 = vmatpush2.xpose.msra.mxu0 0.0
  %734 = vmatprep.subr.mxu0 0.0
  %735 = vmatpush2.xpose.msra.mxu0 0.0
  %736 = vmatprep.subr.mxu0 0.0
  %737 = vmatpush2.xpose.msra.mxu0 0.0
  %738 = vmatprep.subr.mxu0 0.0
  %739 = vmatpush2.xpose.msra.mxu0 0.0
  %740 = vmatprep.subr.mxu0 0.0
  %741 = vmatpush2.xpose.msra.mxu0 0.0
  %742 = vmatprep.subr.mxu0 0.0
  %743 = vmatpush2.xpose.msra.mxu0 0.0
  %744 = vmatprep.subr.mxu0 0.0
  %745 = vmatpush2.xpose.msra.mxu0 0.0
  %746 = vmatprep.subr.mxu0 0.0
  %747 = vmatpush2.xpose.msra.mxu0 0.0
  %748 = vmatprep.mubr.f32.mxu0 0.0
  %v749 = vand.u32 %v72, 4294901760
  %750 = vmatmul.mubr.f32.gmra.mxu0 %v749
  %v751 = vpop.f32.mrf.mxu0
  %v752 = vadd.f32 %v655, %v751
  %v753 = vpop.f32.mrf.mxu0
  %754 = vmatprep.mubr.f32.mxu0 0.0
  %v755 = vand.u32 %v75, 4294901760
  %756 = vmatmul.mubr.f32.gmra.mxu0 %v755
  %v757 = vpop.f32.mrf.mxu0
  %v758 = vadd.f32 %v661, %v757
  %v759 = vpop.f32.mrf.mxu0
  %760 = vmatprep.mubr.f32.mxu0 0.0
  %v761 = vand.u32 %v78, 4294901760
  %762 = vmatmul.mubr.f32.gmra.mxu0 %v761
  %v763 = vpop.f32.mrf.mxu0
  %v764 = vadd.f32 %v667, %v763
  %v765 = vpop.f32.mrf.mxu0
  %766 = vmatprep.mubr.f32.mxu0 0.0
  %v767 = vand.u32 %v81, 4294901760
  %768 = vmatmul.mubr.f32.gmra.mxu0 %v767
  %v769 = vpop.f32.mrf.mxu0
  %v770 = vadd.f32 %v673, %v769
  %v771 = vpop.f32.mrf.mxu0
  %772 = vdwg.mxu0
  %v773 = vmul.f32 %v752, %v752
  %v774 = vmul.f32 %v758, %v758
  %v775 = vmul.f32 %v764, %v764
  %v776 = vmul.f32 %v770, %v770
  %v777 = vmul.f32 %v752, %v773
  %v778 = vmul.f32 %v758, %v774
  %v779 = vmul.f32 %v764, %v775
  %v780 = vmul.f32 %v770, %v776
  %v781 = vmul.f32 %v777, 0.044715
  %v782 = vmul.f32 %v778, 0.044715
  %v783 = vmul.f32 %v779, 0.044715
  %v784 = vmul.f32 %v780, 0.044715
  %v785 = vadd.f32 %v752, %v781
  %v786 = vadd.f32 %v758, %v782
  %v787 = vadd.f32 %v764, %v783
  %v788 = vadd.f32 %v770, %v784
  %v789 = vmul.f32 %v785, 0.7978846
  %v790 = vmul.f32 %v786, 0.7978846
  %v791 = vmul.f32 %v787, 0.7978846
  %v792 = vmul.f32 %v788, 0.7978846
  %v793 = vtanh.pop %v789
  %v794 = vtanh.pop %v790
  %v795 = vtanh.pop %v791
  %v796 = vtanh.pop %v792
  %v797 = vadd.f32 %v793, 1.0
  %v798 = vadd.f32 %v794, 1.0
  %v799 = vadd.f32 %v795, 1.0
  %v800 = vadd.f32 %v796, 1.0
  %v801 = vmul.f32 %v797, 0.5
  %v802 = vmul.f32 %v798, 0.5
  %v803 = vmul.f32 %v799, 0.5
  %v804 = vmul.f32 %v800, 0.5
  %v805 = vmul.f32 %v752, %v801
  %v806 = vmul.f32 %v758, %v802
  %v807 = vmul.f32 %v764, %v803
  %v808 = vmul.f32 %v770, %v804
  %v809 = vld [vmem:[%s3] sm:$0xff]
  %v810 = vld [vmem:[%s3 + $0x8] sm:$0xff]
  %v811 = vld [vmem:[%s3 + $0x10] sm:$0xff]
  %v812 = vld [vmem:[%s3 + $0x18] sm:$0xff]
  %v813 = vld [vmem:[%s4] sm:$0xff]
  %v814 = vld [vmem:[%s4 + $0x8] sm:$0xff]
  %v815 = vld [vmem:[%s4 + $0x10] sm:$0xff]
  %v816 = vld [vmem:[%s4 + $0x18] sm:$0xff]
  %818 = vset.pattern.permute.xlu0 0
  %819 = vperm.xlu0 %818, %v813
  %v820 = vpop.permute.xlu0 %819
  %823 = vset.pattern.permute.xlu0 0
  %824 = vperm.xlu0 %823, %v814
  %v825 = vpop.permute.xlu0 %824
  %828 = vset.pattern.permute.xlu0 0
  %829 = vperm.xlu0 %828, %v815
  %v830 = vpop.permute.xlu0 %829
  %833 = vset.pattern.permute.xlu0 0
  %834 = vperm.xlu0 %833, %v816
  %v835 = vpop.permute.xlu0 %834
  %vm837 = vcmask 261120
  %v839 = vsel %vm837, %v809, 0
  %v842 = vsel %vm837, %v810, 0
  %v845 = vsel %vm837, %v811, 0
  %v848 = vsel %vm837, %v812, 0
  %850 = vmatprep.subr.mxu0 0.0
  %851 = vmatpush1.msra.mxu0 0.0
  %852 = vmatprep.subr.mxu0 0.0
  %853 = vmatpush1.msra.mxu0 0.0
  %854 = vmatprep.subr.mxu0 0.0
  %855 = vmatpush1.msra.mxu0 0.0
  %856 = vmatprep.subr.mxu0 0.0
  %857 = vmatpush1.msra.mxu0 0.0
  %858 = vmatprep.subr.mxu0 0.0
  %859 = vmatpush1.msra.mxu0 0.0
  %860 = vmatprep.subr.mxu0 0.0
  %861 = vmatpush1.msra.mxu0 0.0
  %862 = vmatprep.subr.mxu0 0.0
  %863 = vmatpush1.msra.mxu0 0.0
  %864 = vmatprep.subr.mxu0 0.0
  %865 = vmatpush1.msra.mxu0 0.0
  %866 = vmatprep.subr.mxu0 0.0
  %867 = vmatpush1.msra.mxu0 0.0
  %868 = vmatprep.subr.mxu0 0.0
  %869 = vmatpush1.msra.mxu0 0.0
  %870 = vmatprep.subr.mxu0 0.0
  %871 = vmatpush1.msra.mxu0 0.0
  %872 = vmatprep.subr.mxu0 0.0
  %873 = vmatpush1.msra.mxu0 0.0
  %874 = vmatprep.subr.mxu0 0.0
  %v875 = vand.u32 %v808, 4294901760
  %876 = vmatpush1.msra.mxu0 %v875
  %877 = vmatprep.subr.mxu0 0.0
  %v878 = vand.u32 %v807, 4294901760
  %879 = vmatpush1.msra.mxu0 %v878
  %880 = vmatprep.subr.mxu0 0.0
  %v881 = vand.u32 %v806, 4294901760
  %882 = vmatpush1.msra.mxu0 %v881
  %883 = vmatprep.subr.mxu0 0.0
  %v884 = vand.u32 %v805, 4294901760
  %885 = vmatpush1.msra.mxu0 %v884
  %886 = vmatprep.subr.mxu0 0.0
  %887 = vmatpush2.msra.mxu0 0.0
  %888 = vmatprep.subr.mxu0 0.0
  %889 = vmatpush2.msra.mxu0 0.0
  %890 = vmatprep.subr.mxu0 0.0
  %891 = vmatpush2.msra.mxu0 0.0
  %892 = vmatprep.subr.mxu0 0.0
  %893 = vmatpush2.msra.mxu0 0.0
  %894 = vmatprep.subr.mxu0 0.0
  %895 = vmatpush2.msra.mxu0 0.0
  %896 = vmatprep.subr.mxu0 0.0
  %897 = vmatpush2.msra.mxu0 0.0
  %898 = vmatprep.subr.mxu0 0.0
  %899 = vmatpush2.msra.mxu0 0.0
  %900 = vmatprep.subr.mxu0 0.0
  %901 = vmatpush2.msra.mxu0 0.0
  %902 = vmatprep.subr.mxu0 0.0
  %903 = vmatpush2.msra.mxu0 0.0
  %904 = vmatprep.subr.mxu0 0.0
  %905 = vmatpush2.msra.mxu0 0.0
  %906 = vmatprep.subr.mxu0 0.0
  %907 = vmatpush2.msra.mxu0 0.0
  %908 = vmatprep.subr.mxu0 0.0
  %909 = vmatpush2.msra.mxu0 0.0
  %910 = vmatprep.subr.mxu0 0.0
  %911 = vmatpush2.msra.mxu0 0.0
  %912 = vmatprep.subr.mxu0 0.0
  %913 = vmatpush2.msra.mxu0 0.0
  %914 = vmatprep.subr.mxu0 0.0
  %915 = vmatpush2.msra.mxu0 0.0
  %916 = vmatprep.subr.mxu0 0.0
  %917 = vmatpush2.msra.mxu0 0.0
  %918 = vmatprep.mubr.f32.mxu0 0.0
  %v919 = vand.u32 %v839, 4294901760
  %v920 = vsub.f32 %v839, %v919
  %v921 = vand.u32 %v920, 4294901760
  %v922 = vsub.f32 %v920, %v921
  %v923 = vand.u32 %v922, 4294901760
  %924 = vmatmul.mubr.f32.gmra.mxu0 %v923
  %v925 = vpop.f32.mrf.mxu0
  %v926 = vadd.f32 %v820, %v925
  %v927 = vpop.f32.mrf.mxu0
  %928 = vmatprep.mubr.f32.mxu0 0.0
  %v929 = vand.u32 %v842, 4294901760
  %v930 = vsub.f32 %v842, %v929
  %v931 = vand.u32 %v930, 4294901760
  %v932 = vsub.f32 %v930, %v931
  %v933 = vand.u32 %v932, 4294901760
  %934 = vmatmul.mubr.f32.gmra.mxu0 %v933
  %v935 = vpop.f32.mrf.mxu0
  %v936 = vadd.f32 %v825, %v935
  %v937 = vpop.f32.mrf.mxu0
  %938 = vmatprep.mubr.f32.mxu0 0.0
  %v939 = vand.u32 %v845, 4294901760
  %v940 = vsub.f32 %v845, %v939
  %v941 = vand.u32 %v940, 4294901760
  %v942 = vsub.f32 %v940, %v941
  %v943 = vand.u32 %v942, 4294901760
  %944 = vmatmul.mubr.f32.gmra.mxu0 %v943
  %v945 = vpop.f32.mrf.mxu0
  %v946 = vadd.f32 %v830, %v945
  %v947 = vpop.f32.mrf.mxu0
  %948 = vmatprep.mubr.f32.mxu0 0.0
  %v949 = vand.u32 %v848, 4294901760
  %v950 = vsub.f32 %v848, %v949
  %v951 = vand.u32 %v950, 4294901760
  %v952 = vsub.f32 %v950, %v951
  %v953 = vand.u32 %v952, 4294901760
  %954 = vmatmul.mubr.f32.gmra.mxu0 %v953
  %v955 = vpop.f32.mrf.mxu0
  %v956 = vadd.f32 %v835, %v955
  %v957 = vpop.f32.mrf.mxu0
  %958 = vdwg.mxu0
  %959 = vmatprep.subr.mxu0 0.0
  %960 = vmatpush1.msra.mxu0 0.0
  %961 = vmatprep.subr.mxu0 0.0
  %962 = vmatpush1.msra.mxu0 0.0
  %963 = vmatprep.subr.mxu0 0.0
  %964 = vmatpush1.msra.mxu0 0.0
  %965 = vmatprep.subr.mxu0 0.0
  %966 = vmatpush1.msra.mxu0 0.0
  %967 = vmatprep.subr.mxu0 0.0
  %968 = vmatpush1.msra.mxu0 0.0
  %969 = vmatprep.subr.mxu0 0.0
  %970 = vmatpush1.msra.mxu0 0.0
  %971 = vmatprep.subr.mxu0 0.0
  %972 = vmatpush1.msra.mxu0 0.0
  %973 = vmatprep.subr.mxu0 0.0
  %974 = vmatpush1.msra.mxu0 0.0
  %975 = vmatprep.subr.mxu0 0.0
  %976 = vmatpush1.msra.mxu0 0.0
  %977 = vmatprep.subr.mxu0 0.0
  %978 = vmatpush1.msra.mxu0 0.0
  %979 = vmatprep.subr.mxu0 0.0
  %980 = vmatpush1.msra.mxu0 0.0
  %981 = vmatprep.subr.mxu0 0.0
  %982 = vmatpush1.msra.mxu0 0.0
  %983 = vmatprep.subr.mxu0 0.0
  %v984 = vand.u32 %v808, 4294901760
  %v985 = vsub.f32 %v808, %v984
  %v986 = vand.u32 %v985, 4294901760
  %v987 = vsub.f32 %v985, %v986
  %v988 = vand.u32 %v987, 4294901760
  %989 = vmatpush1.msra.mxu0 %v988
  %990 = vmatprep.subr.mxu0 0.0
  %v991 = vand.u32 %v807, 4294901760
  %v992 = vsub.f32 %v807, %v991
  %v993 = vand.u32 %v992, 4294901760
  %v994 = vsub.f32 %v992, %v993
  %v995 = vand.u32 %v994, 4294901760
  %996 = vmatpush1.msra.mxu0 %v995
  %997 = vmatprep.subr.mxu0 0.0
  %v998 = vand.u32 %v806, 4294901760
  %v999 = vsub.f32 %v806, %v998
  %v1000 = vand.u32 %v999, 4294901760
  %v1001 = vsub.f32 %v999, %v1000
  %v1002 = vand.u32 %v1001, 4294901760
  %1003 = vmatpush1.msra.mxu0 %v1002
  %1004 = vmatprep.subr.mxu0 0.0
  %v1005 = vand.u32 %v805, 4294901760
  %v1006 = vsub.f32 %v805, %v1005
  %v1007 = vand.u32 %v1006, 4294901760
  %v1008 = vsub.f32 %v1006, %v1007
  %v1009 = vand.u32 %v1008, 4294901760
  %1010 = vmatpush1.msra.mxu0 %v1009
  %1011 = vmatprep.subr.mxu0 0.0
  %1012 = vmatpush2.msra.mxu0 0.0
  %1013 = vmatprep.subr.mxu0 0.0
  %1014 = vmatpush2.msra.mxu0 0.0
  %1015 = vmatprep.subr.mxu0 0.0
  %1016 = vmatpush2.msra.mxu0 0.0
  %1017 = vmatprep.subr.mxu0 0.0
  %1018 = vmatpush2.msra.mxu0 0.0
  %1019 = vmatprep.subr.mxu0 0.0
  %1020 = vmatpush2.msra.mxu0 0.0
  %1021 = vmatprep.subr.mxu0 0.0
  %1022 = vmatpush2.msra.mxu0 0.0
  %1023 = vmatprep.subr.mxu0 0.0
  %1024 = vmatpush2.msra.mxu0 0.0
  %1025 = vmatprep.subr.mxu0 0.0
  %1026 = vmatpush2.msra.mxu0 0.0
  %1027 = vmatprep.subr.mxu0 0.0
  %1028 = vmatpush2.msra.mxu0 0.0
  %1029 = vmatprep.subr.mxu0 0.0
  %1030 = vmatpush2.msra.mxu0 0.0
  %1031 = vmatprep.subr.mxu0 0.0
  %1032 = vmatpush2.msra.mxu0 0.0
  %1033 = vmatprep.subr.mxu0 0.0
  %1034 = vmatpush2.msra.mxu0 0.0
  %1035 = vmatprep.subr.mxu0 0.0
  %1036 = vmatpush2.msra.mxu0 0.0
  %1037 = vmatprep.subr.mxu0 0.0
  %1038 = vmatpush2.msra.mxu0 0.0
  %1039 = vmatprep.subr.mxu0 0.0
  %1040 = vmatpush2.msra.mxu0 0.0
  %1041 = vmatprep.subr.mxu0 0.0
  %1042 = vmatpush2.msra.mxu0 0.0
  %1043 = vmatprep.mubr.f32.mxu0 0.0
  %v1044 = vand.u32 %v839, 4294901760
  %1045 = vmatmul.mubr.f32.gmra.mxu0 %v1044
  %v1046 = vpop.f32.mrf.mxu0
  %v1047 = vadd.f32 %v926, %v1046
  %v1048 = vpop.f32.mrf.mxu0
  %1049 = vmatprep.mubr.f32.mxu0 0.0
  %v1050 = vand.u32 %v842, 4294901760
  %1051 = vmatmul.mubr.f32.gmra.mxu0 %v1050
  %v1052 = vpop.f32.mrf.mxu0
  %v1053 = vadd.f32 %v936, %v1052
  %v1054 = vpop.f32.mrf.mxu0
  %1055 = vmatprep.mubr.f32.mxu0 0.0
  %v1056 = vand.u32 %v845, 4294901760
  %1057 = vmatmul.mubr.f32.gmra.mxu0 %v1056
  %v1058 = vpop.f32.mrf.mxu0
  %v1059 = vadd.f32 %v946, %v1058
  %v1060 = vpop.f32.mrf.mxu0
  %1061 = vmatprep.mubr.f32.mxu0 0.0
  %v1062 = vand.u32 %v848, 4294901760
  %1063 = vmatmul.mubr.f32.gmra.mxu0 %v1062
  %v1064 = vpop.f32.mrf.mxu0
  %v1065 = vadd.f32 %v956, %v1064
  %v1066 = vpop.f32.mrf.mxu0
  %1067 = vdwg.mxu0
  %1068 = vmatprep.subr.mxu0 0.0
  %1069 = vmatpush1.msra.mxu0 0.0
  %1070 = vmatprep.subr.mxu0 0.0
  %1071 = vmatpush1.msra.mxu0 0.0
  %1072 = vmatprep.subr.mxu0 0.0
  %1073 = vmatpush1.msra.mxu0 0.0
  %1074 = vmatprep.subr.mxu0 0.0
  %1075 = vmatpush1.msra.mxu0 0.0
  %1076 = vmatprep.subr.mxu0 0.0
  %1077 = vmatpush1.msra.mxu0 0.0
  %1078 = vmatprep.subr.mxu0 0.0
  %1079 = vmatpush1.msra.mxu0 0.0
  %1080 = vmatprep.subr.mxu0 0.0
  %1081 = vmatpush1.msra.mxu0 0.0
  %1082 = vmatprep.subr.mxu0 0.0
  %1083 = vmatpush1.msra.mxu0 0.0
  %1084 = vmatprep.subr.mxu0 0.0
  %1085 = vmatpush1.msra.mxu0 0.0
  %1086 = vmatprep.subr.mxu0 0.0
  %1087 = vmatpush1.msra.mxu0 0.0
  %1088 = vmatprep.subr.mxu0 0.0
  %1089 = vmatpush1.msra.mxu0 0.0
  %1090 = vmatprep.subr.mxu0 0.0
  %1091 = vmatpush1.msra.mxu0 0.0
  %1092 = vmatprep.subr.mxu0 0.0
  %v1093 = vand.u32 %v808, 4294901760
  %v1094 = vsub.f32 %v808, %v1093
  %1095 = vmatpush1.msra.mxu0 %v1094
  %1096 = vmatprep.subr.mxu0 0.0
  %v1097 = vand.u32 %v807, 4294901760
  %v1098 = vsub.f32 %v807, %v1097
  %1099 = vmatpush1.msra.mxu0 %v1098
  %1100 = vmatprep.subr.mxu0 0.0
  %v1101 = vand.u32 %v806, 4294901760
  %v1102 = vsub.f32 %v806, %v1101
  %1103 = vmatpush1.msra.mxu0 %v1102
  %1104 = vmatprep.subr.mxu0 0.0
  %v1105 = vand.u32 %v805, 4294901760
  %v1106 = vsub.f32 %v805, %v1105
  %1107 = vmatpush1.msra.mxu0 %v1106
  %1108 = vmatprep.subr.mxu0 0.0
  %1109 = vmatpush2.msra.mxu0 0.0
  %1110 = vmatprep.subr.mxu0 0.0
  %1111 = vmatpush2.msra.mxu0 0.0
  %1112 = vmatprep.subr.mxu0 0.0
  %1113 = vmatpush2.msra.mxu0 0.0
  %1114 = vmatprep.subr.mxu0 0.0
  %1115 = vmatpush2.msra.mxu0 0.0
  %1116 = vmatprep.subr.mxu0 0.0
  %1117 = vmatpush2.msra.mxu0 0.0
  %1118 = vmatprep.subr.mxu0 0.0
  %1119 = vmatpush2.msra.mxu0 0.0
  %1120 = vmatprep.subr.mxu0 0.0
  %1121 = vmatpush2.msra.mxu0 0.0
  %1122 = vmatprep.subr.mxu0 0.0
  %1123 = vmatpush2.msra.mxu0 0.0
  %1124 = vmatprep.subr.mxu0 0.0
  %1125 = vmatpush2.msra.mxu0 0.0
  %1126 = vmatprep.subr.mxu0 0.0
  %1127 = vmatpush2.msra.mxu0 0.0
  %1128 = vmatprep.subr.mxu0 0.0
  %1129 = vmatpush2.msra.mxu0 0.0
  %1130 = vmatprep.subr.mxu0 0.0
  %1131 = vmatpush2.msra.mxu0 0.0
  %1132 = vmatprep.subr.mxu0 0.0
  %1133 = vmatpush2.msra.mxu0 0.0
  %1134 = vmatprep.subr.mxu0 0.0
  %1135 = vmatpush2.msra.mxu0 0.0
  %1136 = vmatprep.subr.mxu0 0.0
  %1137 = vmatpush2.msra.mxu0 0.0
  %1138 = vmatprep.subr.mxu0 0.0
  %1139 = vmatpush2.msra.mxu0 0.0
  %1140 = vmatprep.mubr.f32.mxu0 0.0
  %v1141 = vand.u32 %v839, 4294901760
  %v1142 = vsub.f32 %v839, %v1141
  %1143 = vmatmul.mubr.f32.gmra.mxu0 %v1142
  %v1144 = vpop.f32.mrf.mxu0
  %v1145 = vadd.f32 %v1047, %v1144
  %v1146 = vpop.f32.mrf.mxu0
  %1147 = vmatprep.mubr.f32.mxu0 0.0
  %v1148 = vand.u32 %v842, 4294901760
  %v1149 = vsub.f32 %v842, %v1148
  %1150 = vmatmul.mubr.f32.gmra.mxu0 %v1149
  %v1151 = vpop.f32.mrf.mxu0
  %v1152 = vadd.f32 %v1053, %v1151
  %v1153 = vpop.f32.mrf.mxu0
  %1154 = vmatprep.mubr.f32.mxu0 0.0
  %v1155 = vand.u32 %v845, 4294901760
  %v1156 = vsub.f32 %v845, %v1155
  %1157 = vmatmul.mubr.f32.gmra.mxu0 %v1156
  %v1158 = vpop.f32.mrf.mxu0
  %v1159 = vadd.f32 %v1059, %v1158
  %v1160 = vpop.f32.mrf.mxu0
  %1161 = vmatprep.mubr.f32.mxu0 0.0
  %v1162 = vand.u32 %v848, 4294901760
  %v1163 = vsub.f32 %v848, %v1162
  %1164 = vmatmul.mubr.f32.gmra.mxu0 %v1163
  %v1165 = vpop.f32.mrf.mxu0
  %v1166 = vadd.f32 %v1065, %v1165
  %v1167 = vpop.f32.mrf.mxu0
  %1168 = vdwg.mxu0
  %1169 = vmatprep.subr.mxu0 0.0
  %1170 = vmatpush1.msra.mxu0 0.0
  %1171 = vmatprep.subr.mxu0 0.0
  %1172 = vmatpush1.msra.mxu0 0.0
  %1173 = vmatprep.subr.mxu0 0.0
  %1174 = vmatpush1.msra.mxu0 0.0
  %1175 = vmatprep.subr.mxu0 0.0
  %1176 = vmatpush1.msra.mxu0 0.0
  %1177 = vmatprep.subr.mxu0 0.0
  %1178 = vmatpush1.msra.mxu0 0.0
  %1179 = vmatprep.subr.mxu0 0.0
  %1180 = vmatpush1.msra.mxu0 0.0
  %1181 = vmatprep.subr.mxu0 0.0
  %1182 = vmatpush1.msra.mxu0 0.0
  %1183 = vmatprep.subr.mxu0 0.0
  %1184 = vmatpush1.msra.mxu0 0.0
  %1185 = vmatprep.subr.mxu0 0.0
  %1186 = vmatpush1.msra.mxu0 0.0
  %1187 = vmatprep.subr.mxu0 0.0
  %1188 = vmatpush1.msra.mxu0 0.0
  %1189 = vmatprep.subr.mxu0 0.0
  %1190 = vmatpush1.msra.mxu0 0.0
  %1191 = vmatprep.subr.mxu0 0.0
  %1192 = vmatpush1.msra.mxu0 0.0
  %1193 = vmatprep.subr.mxu0 0.0
  %v1194 = vand.u32 %v808, 4294901760
  %1195 = vmatpush1.msra.mxu0 %v1194
  %1196 = vmatprep.subr.mxu0 0.0
  %v1197 = vand.u32 %v807, 4294901760
  %1198 = vmatpush1.msra.mxu0 %v1197
  %1199 = vmatprep.subr.mxu0 0.0
  %v1200 = vand.u32 %v806, 4294901760
  %1201 = vmatpush1.msra.mxu0 %v1200
  %1202 = vmatprep.subr.mxu0 0.0
  %v1203 = vand.u32 %v805, 4294901760
  %1204 = vmatpush1.msra.mxu0 %v1203
  %1205 = vmatprep.subr.mxu0 0.0
  %1206 = vmatpush2.msra.mxu0 0.0
  %1207 = vmatprep.subr.mxu0 0.0
  %1208 = vmatpush2.msra.mxu0 0.0
  %1209 = vmatprep.subr.mxu0 0.0
  %1210 = vmatpush2.msra.mxu0 0.0
  %1211 = vmatprep.subr.mxu0 0.0
  %1212 = vmatpush2.msra.mxu0 0.0
  %1213 = vmatprep.subr.mxu0 0.0
  %1214 = vmatpush2.msra.mxu0 0.0
  %1215 = vmatprep.subr.mxu0 0.0
  %1216 = vmatpush2.msra.mxu0 0.0
  %1217 = vmatprep.subr.mxu0 0.0
  %1218 = vmatpush2.msra.mxu0 0.0
  %1219 = vmatprep.subr.mxu0 0.0
  %1220 = vmatpush2.msra.mxu0 0.0
  %1221 = vmatprep.subr.mxu0 0.0
  %1222 = vmatpush2.msra.mxu0 0.0
  %1223 = vmatprep.subr.mxu0 0.0
  %1224 = vmatpush2.msra.mxu0 0.0
  %1225 = vmatprep.subr.mxu0 0.0
  %1226 = vmatpush2.msra.mxu0 0.0
  %1227 = vmatprep.subr.mxu0 0.0
  %1228 = vmatpush2.msra.mxu0 0.0
  %1229 = vmatprep.subr.mxu0 0.0
  %1230 = vmatpush2.msra.mxu0 0.0
  %1231 = vmatprep.subr.mxu0 0.0
  %1232 = vmatpush2.msra.mxu0 0.0
  %1233 = vmatprep.subr.mxu0 0.0
  %1234 = vmatpush2.msra.mxu0 0.0
  %1235 = vmatprep.subr.mxu0 0.0
  %1236 = vmatpush2.msra.mxu0 0.0
  %1237 = vmatprep.mubr.f32.mxu0 0.0
  %v1238 = vand.u32 %v839, 4294901760
  %v1239 = vsub.f32 %v839, %v1238
  %v1240 = vand.u32 %v1239, 4294901760
  %1241 = vmatmul.mubr.f32.gmra.mxu0 %v1240
  %v1242 = vpop.f32.mrf.mxu0
  %v1243 = vadd.f32 %v1145, %v1242
  %v1244 = vpop.f32.mrf.mxu0
  %1245 = vmatprep.mubr.f32.mxu0 0.0
  %v1246 = vand.u32 %v842, 4294901760
  %v1247 = vsub.f32 %v842, %v1246
  %v1248 = vand.u32 %v1247, 4294901760
  %1249 = vmatmul.mubr.f32.gmra.mxu0 %v1248
  %v1250 = vpop.f32.mrf.mxu0
  %v1251 = vadd.f32 %v1152, %v1250
  %v1252 = vpop.f32.mrf.mxu0
  %1253 = vmatprep.mubr.f32.mxu0 0.0
  %v1254 = vand.u32 %v845, 4294901760
  %v1255 = vsub.f32 %v845, %v1254
  %v1256 = vand.u32 %v1255, 4294901760
  %1257 = vmatmul.mubr.f32.gmra.mxu0 %v1256
  %v1258 = vpop.f32.mrf.mxu0
  %v1259 = vadd.f32 %v1159, %v1258
  %v1260 = vpop.f32.mrf.mxu0
  %1261 = vmatprep.mubr.f32.mxu0 0.0
  %v1262 = vand.u32 %v848, 4294901760
  %v1263 = vsub.f32 %v848, %v1262
  %v1264 = vand.u32 %v1263, 4294901760
  %1265 = vmatmul.mubr.f32.gmra.mxu0 %v1264
  %v1266 = vpop.f32.mrf.mxu0
  %v1267 = vadd.f32 %v1166, %v1266
  %v1268 = vpop.f32.mrf.mxu0
  %1269 = vdwg.mxu0
  %1270 = vmatprep.subr.mxu0 0.0
  %1271 = vmatpush1.msra.mxu0 0.0
  %1272 = vmatprep.subr.mxu0 0.0
  %1273 = vmatpush1.msra.mxu0 0.0
  %1274 = vmatprep.subr.mxu0 0.0
  %1275 = vmatpush1.msra.mxu0 0.0
  %1276 = vmatprep.subr.mxu0 0.0
  %1277 = vmatpush1.msra.mxu0 0.0
  %1278 = vmatprep.subr.mxu0 0.0
  %1279 = vmatpush1.msra.mxu0 0.0
  %1280 = vmatprep.subr.mxu0 0.0
  %1281 = vmatpush1.msra.mxu0 0.0
  %1282 = vmatprep.subr.mxu0 0.0
  %1283 = vmatpush1.msra.mxu0 0.0
  %1284 = vmatprep.subr.mxu0 0.0
  %1285 = vmatpush1.msra.mxu0 0.0
  %1286 = vmatprep.subr.mxu0 0.0
  %1287 = vmatpush1.msra.mxu0 0.0
  %1288 = vmatprep.subr.mxu0 0.0
  %1289 = vmatpush1.msra.mxu0 0.0
  %1290 = vmatprep.subr.mxu0 0.0
  %1291 = vmatpush1.msra.mxu0 0.0
  %1292 = vmatprep.subr.mxu0 0.0
  %1293 = vmatpush1.msra.mxu0 0.0
  %1294 = vmatprep.subr.mxu0 0.0
  %v1295 = vand.u32 %v808, 4294901760
  %v1296 = vsub.f32 %v808, %v1295
  %v1297 = vand.u32 %v1296, 4294901760
  %1298 = vmatpush1.msra.mxu0 %v1297
  %1299 = vmatprep.subr.mxu0 0.0
  %v1300 = vand.u32 %v807, 4294901760
  %v1301 = vsub.f32 %v807, %v1300
  %v1302 = vand.u32 %v1301, 4294901760
  %1303 = vmatpush1.msra.mxu0 %v1302
  %1304 = vmatprep.subr.mxu0 0.0
  %v1305 = vand.u32 %v806, 4294901760
  %v1306 = vsub.f32 %v806, %v1305
  %v1307 = vand.u32 %v1306, 4294901760
  %1308 = vmatpush1.msra.mxu0 %v1307
  %1309 = vmatprep.subr.mxu0 0.0
  %v1310 = vand.u32 %v805, 4294901760
  %v1311 = vsub.f32 %v805, %v1310
  %v1312 = vand.u32 %v1311, 4294901760
  %1313 = vmatpush1.msra.mxu0 %v1312
  %1314 = vmatprep.subr.mxu0 0.0
  %1315 = vmatpush2.msra.mxu0 0.0
  %1316 = vmatprep.subr.mxu0 0.0
  %1317 = vmatpush2.msra.mxu0 0.0
  %1318 = vmatprep.subr.mxu0 0.0
  %1319 = vmatpush2.msra.mxu0 0.0
  %1320 = vmatprep.subr.mxu0 0.0
  %1321 = vmatpush2.msra.mxu0 0.0
  %1322 = vmatprep.subr.mxu0 0.0
  %1323 = vmatpush2.msra.mxu0 0.0
  %1324 = vmatprep.subr.mxu0 0.0
  %1325 = vmatpush2.msra.mxu0 0.0
  %1326 = vmatprep.subr.mxu0 0.0
  %1327 = vmatpush2.msra.mxu0 0.0
  %1328 = vmatprep.subr.mxu0 0.0
  %1329 = vmatpush2.msra.mxu0 0.0
  %1330 = vmatprep.subr.mxu0 0.0
  %1331 = vmatpush2.msra.mxu0 0.0
  %1332 = vmatprep.subr.mxu0 0.0
  %1333 = vmatpush2.msra.mxu0 0.0
  %1334 = vmatprep.subr.mxu0 0.0
  %1335 = vmatpush2.msra.mxu0 0.0
  %1336 = vmatprep.subr.mxu0 0.0
  %1337 = vmatpush2.msra.mxu0 0.0
  %1338 = vmatprep.subr.mxu0 0.0
  %1339 = vmatpush2.msra.mxu0 0.0
  %1340 = vmatprep.subr.mxu0 0.0
  %1341 = vmatpush2.msra.mxu0 0.0
  %1342 = vmatprep.subr.mxu0 0.0
  %1343 = vmatpush2.msra.mxu0 0.0
  %1344 = vmatprep.subr.mxu0 0.0
  %1345 = vmatpush2.msra.mxu0 0.0
  %1346 = vmatprep.mubr.f32.mxu0 0.0
  %v1347 = vand.u32 %v839, 4294901760
  %1348 = vmatmul.mubr.f32.gmra.mxu0 %v1347
  %v1349 = vpop.f32.mrf.mxu0
  %v1350 = vadd.f32 %v1243, %v1349
  %v1351 = vpop.f32.mrf.mxu0
  %1352 = vmatprep.mubr.f32.mxu0 0.0
  %v1353 = vand.u32 %v842, 4294901760
  %1354 = vmatmul.mubr.f32.gmra.mxu0 %v1353
  %v1355 = vpop.f32.mrf.mxu0
  %v1356 = vadd.f32 %v1251, %v1355
  %v1357 = vpop.f32.mrf.mxu0
  %1358 = vmatprep.mubr.f32.mxu0 0.0
  %v1359 = vand.u32 %v845, 4294901760
  %1360 = vmatmul.mubr.f32.gmra.mxu0 %v1359
  %v1361 = vpop.f32.mrf.mxu0
  %v1362 = vadd.f32 %v1259, %v1361
  %v1363 = vpop.f32.mrf.mxu0
  %1364 = vmatprep.mubr.f32.mxu0 0.0
  %v1365 = vand.u32 %v848, 4294901760
  %1366 = vmatmul.mubr.f32.gmra.mxu0 %v1365
  %v1367 = vpop.f32.mrf.mxu0
  %v1368 = vadd.f32 %v1267, %v1367
  %v1369 = vpop.f32.mrf.mxu0
  %1370 = vdwg.mxu0
  %1371 = vmatprep.subr.mxu0 0.0
  %1372 = vmatpush1.msra.mxu0 0.0
  %1373 = vmatprep.subr.mxu0 0.0
  %1374 = vmatpush1.msra.mxu0 0.0
  %1375 = vmatprep.subr.mxu0 0.0
  %1376 = vmatpush1.msra.mxu0 0.0
  %1377 = vmatprep.subr.mxu0 0.0
  %1378 = vmatpush1.msra.mxu0 0.0
  %1379 = vmatprep.subr.mxu0 0.0
  %1380 = vmatpush1.msra.mxu0 0.0
  %1381 = vmatprep.subr.mxu0 0.0
  %1382 = vmatpush1.msra.mxu0 0.0
  %1383 = vmatprep.subr.mxu0 0.0
  %1384 = vmatpush1.msra.mxu0 0.0
  %1385 = vmatprep.subr.mxu0 0.0
  %1386 = vmatpush1.msra.mxu0 0.0
  %1387 = vmatprep.subr.mxu0 0.0
  %1388 = vmatpush1.msra.mxu0 0.0
  %1389 = vmatprep.subr.mxu0 0.0
  %1390 = vmatpush1.msra.mxu0 0.0
  %1391 = vmatprep.subr.mxu0 0.0
  %1392 = vmatpush1.msra.mxu0 0.0
  %1393 = vmatprep.subr.mxu0 0.0
  %1394 = vmatpush1.msra.mxu0 0.0
  %1395 = vmatprep.subr.mxu0 0.0
  %v1396 = vand.u32 %v808, 4294901760
  %1397 = vmatpush1.msra.mxu0 %v1396
  %1398 = vmatprep.subr.mxu0 0.0
  %v1399 = vand.u32 %v807, 4294901760
  %1400 = vmatpush1.msra.mxu0 %v1399
  %1401 = vmatprep.subr.mxu0 0.0
  %v1402 = vand.u32 %v806, 4294901760
  %1403 = vmatpush1.msra.mxu0 %v1402
  %1404 = vmatprep.subr.mxu0 0.0
  %v1405 = vand.u32 %v805, 4294901760
  %1406 = vmatpush1.msra.mxu0 %v1405
  %1407 = vmatprep.subr.mxu0 0.0
  %1408 = vmatpush2.msra.mxu0 0.0
  %1409 = vmatprep.subr.mxu0 0.0
  %1410 = vmatpush2.msra.mxu0 0.0
  %1411 = vmatprep.subr.mxu0 0.0
  %1412 = vmatpush2.msra.mxu0 0.0
  %1413 = vmatprep.subr.mxu0 0.0
  %1414 = vmatpush2.msra.mxu0 0.0
  %1415 = vmatprep.subr.mxu0 0.0
  %1416 = vmatpush2.msra.mxu0 0.0
  %1417 = vmatprep.subr.mxu0 0.0
  %1418 = vmatpush2.msra.mxu0 0.0
  %1419 = vmatprep.subr.mxu0 0.0
  %1420 = vmatpush2.msra.mxu0 0.0
  %1421 = vmatprep.subr.mxu0 0.0
  %1422 = vmatpush2.msra.mxu0 0.0
  %1423 = vmatprep.subr.mxu0 0.0
  %1424 = vmatpush2.msra.mxu0 0.0
  %1425 = vmatprep.subr.mxu0 0.0
  %1426 = vmatpush2.msra.mxu0 0.0
  %1427 = vmatprep.subr.mxu0 0.0
  %1428 = vmatpush2.msra.mxu0 0.0
  %1429 = vmatprep.subr.mxu0 0.0
  %1430 = vmatpush2.msra.mxu0 0.0
  %1431 = vmatprep.subr.mxu0 0.0
  %1432 = vmatpush2.msra.mxu0 0.0
  %1433 = vmatprep.subr.mxu0 0.0
  %1434 = vmatpush2.msra.mxu0 0.0
  %1435 = vmatprep.subr.mxu0 0.0
  %1436 = vmatpush2.msra.mxu0 0.0
  %1437 = vmatprep.subr.mxu0 0.0
  %1438 = vmatpush2.msra.mxu0 0.0
  %1439 = vmatprep.mubr.f32.mxu0 0.0
  %v1440 = vand.u32 %v839, 4294901760
  %1441 = vmatmul.mubr.f32.gmra.mxu0 %v1440
  %v1442 = vpop.f32.mrf.mxu0
  %v1443 = vadd.f32 %v1350, %v1442
  %v1444 = vpop.f32.mrf.mxu0
  %1445 = vmatprep.mubr.f32.mxu0 0.0
  %v1446 = vand.u32 %v842, 4294901760
  %1447 = vmatmul.mubr.f32.gmra.mxu0 %v1446
  %v1448 = vpop.f32.mrf.mxu0
  %v1449 = vadd.f32 %v1356, %v1448
  %v1450 = vpop.f32.mrf.mxu0
  %1451 = vmatprep.mubr.f32.mxu0 0.0
  %v1452 = vand.u32 %v845, 4294901760
  %1453 = vmatmul.mubr.f32.gmra.mxu0 %v1452
  %v1454 = vpop.f32.mrf.mxu0
  %v1455 = vadd.f32 %v1362, %v1454
  %v1456 = vpop.f32.mrf.mxu0
  %1457 = vmatprep.mubr.f32.mxu0 0.0
  %v1458 = vand.u32 %v848, 4294901760
  %1459 = vmatmul.mubr.f32.gmra.mxu0 %v1458
  %v1460 = vpop.f32.mrf.mxu0
  %v1461 = vadd.f32 %v1368, %v1460
  %v1462 = vpop.f32.mrf.mxu0
  %1463 = vdwg.mxu0
  %v1464 = vmul.f32 %v1443, %v1443
  %v1465 = vmul.f32 %v1449, %v1449
  %v1466 = vmul.f32 %v1455, %v1455
  %v1467 = vmul.f32 %v1461, %v1461
  %v1468 = vmul.f32 %v1443, %v1464
  %v1469 = vmul.f32 %v1449, %v1465
  %v1470 = vmul.f32 %v1455, %v1466
  %v1471 = vmul.f32 %v1461, %v1467
  %v1472 = vmul.f32 %v1468, 0.044715
  %v1473 = vmul.f32 %v1469, 0.044715
  %v1474 = vmul.f32 %v1470, 0.044715
  %v1475 = vmul.f32 %v1471, 0.044715
  %v1476 = vadd.f32 %v1443, %v1472
  %v1477 = vadd.f32 %v1449, %v1473
  %v1478 = vadd.f32 %v1455, %v1474
  %v1479 = vadd.f32 %v1461, %v1475
  %v1480 = vmul.f32 %v1476, 0.7978846
  %v1481 = vmul.f32 %v1477, 0.7978846
  %v1482 = vmul.f32 %v1478, 0.7978846
  %v1483 = vmul.f32 %v1479, 0.7978846
  %v1484 = vtanh.pop %v1480
  %v1485 = vtanh.pop %v1481
  %v1486 = vtanh.pop %v1482
  %v1487 = vtanh.pop %v1483
  %v1488 = vadd.f32 %v1484, 1.0
  %v1489 = vadd.f32 %v1485, 1.0
  %v1490 = vadd.f32 %v1486, 1.0
  %v1491 = vadd.f32 %v1487, 1.0
  %v1492 = vmul.f32 %v1488, 0.5
  %v1493 = vmul.f32 %v1489, 0.5
  %v1494 = vmul.f32 %v1490, 0.5
  %v1495 = vmul.f32 %v1491, 0.5
  %v1496 = vmul.f32 %v1443, %v1492
  %v1497 = vmul.f32 %v1449, %v1493
  %v1498 = vmul.f32 %v1455, %v1494
  %v1499 = vmul.f32 %v1461, %v1495
  %v1500 = vld [vmem:[%s5] sm:$0xff]
  %v1501 = vld [vmem:[%s5 + $0x8] sm:$0xff]
  %v1502 = vld [vmem:[%s5 + $0x10] sm:$0xff]
  %v1503 = vld [vmem:[%s5 + $0x18] sm:$0xff]
  %v1504 = vld [vmem:[%s6] sm:$0xff]
  %v1505 = vld [vmem:[%s6 + $0x8] sm:$0xff]
  %v1506 = vld [vmem:[%s6 + $0x10] sm:$0xff]
  %v1507 = vld [vmem:[%s6 + $0x18] sm:$0xff]
  %1509 = vset.pattern.permute.xlu0 0
  %1510 = vperm.xlu0 %1509, %v1504
  %v1511 = vpop.permute.xlu0 %1510
  %1514 = vset.pattern.permute.xlu0 0
  %1515 = vperm.xlu0 %1514, %v1505
  %v1516 = vpop.permute.xlu0 %1515
  %1519 = vset.pattern.permute.xlu0 0
  %1520 = vperm.xlu0 %1519, %v1506
  %v1521 = vpop.permute.xlu0 %1520
  %1524 = vset.pattern.permute.xlu0 0
  %1525 = vperm.xlu0 %1524, %v1507
  %v1526 = vpop.permute.xlu0 %1525
  %v1529 = vsel %vm837, %v1500, 0
  %v1532 = vsel %vm837, %v1501, 0
  %v1535 = vsel %vm837, %v1502, 0
  %v1538 = vsel %vm837, %v1503, 0
  %1540 = vmatprep.subr.mxu0 0.0
  %1541 = vmatpush1.msra.mxu0 0.0
  %1542 = vmatprep.subr.mxu0 0.0
  %1543 = vmatpush1.msra.mxu0 0.0
  %1544 = vmatprep.subr.mxu0 0.0
  %1545 = vmatpush1.msra.mxu0 0.0
  %1546 = vmatprep.subr.mxu0 0.0
  %1547 = vmatpush1.msra.mxu0 0.0
  %1548 = vmatprep.subr.mxu0 0.0
  %1549 = vmatpush1.msra.mxu0 0.0
  %1550 = vmatprep.subr.mxu0 0.0
  %1551 = vmatpush1.msra.mxu0 0.0
  %1552 = vmatprep.subr.mxu0 0.0
  %1553 = vmatpush1.msra.mxu0 0.0
  %1554 = vmatprep.subr.mxu0 0.0
  %1555 = vmatpush1.msra.mxu0 0.0
  %1556 = vmatprep.subr.mxu0 0.0
  %1557 = vmatpush1.msra.mxu0 0.0
  %1558 = vmatprep.subr.mxu0 0.0
  %1559 = vmatpush1.msra.mxu0 0.0
  %1560 = vmatprep.subr.mxu0 0.0
  %1561 = vmatpush1.msra.mxu0 0.0
  %1562 = vmatprep.subr.mxu0 0.0
  %1563 = vmatpush1.msra.mxu0 0.0
  %1564 = vmatprep.subr.mxu0 0.0
  %v1565 = vand.u32 %v1499, 4294901760
  %1566 = vmatpush1.msra.mxu0 %v1565
  %1567 = vmatprep.subr.mxu0 0.0
  %v1568 = vand.u32 %v1498, 4294901760
  %1569 = vmatpush1.msra.mxu0 %v1568
  %1570 = vmatprep.subr.mxu0 0.0
  %v1571 = vand.u32 %v1497, 4294901760
  %1572 = vmatpush1.msra.mxu0 %v1571
  %1573 = vmatprep.subr.mxu0 0.0
  %v1574 = vand.u32 %v1496, 4294901760
  %1575 = vmatpush1.msra.mxu0 %v1574
  %1576 = vmatprep.subr.mxu0 0.0
  %1577 = vmatpush2.msra.mxu0 0.0
  %1578 = vmatprep.subr.mxu0 0.0
  %1579 = vmatpush2.msra.mxu0 0.0
  %1580 = vmatprep.subr.mxu0 0.0
  %1581 = vmatpush2.msra.mxu0 0.0
  %1582 = vmatprep.subr.mxu0 0.0
  %1583 = vmatpush2.msra.mxu0 0.0
  %1584 = vmatprep.subr.mxu0 0.0
  %1585 = vmatpush2.msra.mxu0 0.0
  %1586 = vmatprep.subr.mxu0 0.0
  %1587 = vmatpush2.msra.mxu0 0.0
  %1588 = vmatprep.subr.mxu0 0.0
  %1589 = vmatpush2.msra.mxu0 0.0
  %1590 = vmatprep.subr.mxu0 0.0
  %1591 = vmatpush2.msra.mxu0 0.0
  %1592 = vmatprep.subr.mxu0 0.0
  %1593 = vmatpush2.msra.mxu0 0.0
  %1594 = vmatprep.subr.mxu0 0.0
  %1595 = vmatpush2.msra.mxu0 0.0
  %1596 = vmatprep.subr.mxu0 0.0
  %1597 = vmatpush2.msra.mxu0 0.0
  %1598 = vmatprep.subr.mxu0 0.0
  %1599 = vmatpush2.msra.mxu0 0.0
  %1600 = vmatprep.subr.mxu0 0.0
  %1601 = vmatpush2.msra.mxu0 0.0
  %1602 = vmatprep.subr.mxu0 0.0
  %1603 = vmatpush2.msra.mxu0 0.0
  %1604 = vmatprep.subr.mxu0 0.0
  %1605 = vmatpush2.msra.mxu0 0.0
  %1606 = vmatprep.subr.mxu0 0.0
  %1607 = vmatpush2.msra.mxu0 0.0
  %1608 = vmatprep.mubr.f32.mxu0 0.0
  %v1609 = vand.u32 %v1529, 4294901760
  %v1610 = vsub.f32 %v1529, %v1609
  %v1611 = vand.u32 %v1610, 4294901760
  %v1612 = vsub.f32 %v1610, %v1611
  %v1613 = vand.u32 %v1612, 4294901760
  %1614 = vmatmul.mubr.f32.gmra.mxu0 %v1613
  %v1615 = vpop.f32.mrf.mxu0
  %v1616 = vadd.f32 %v1511, %v1615
  %v1617 = vpop.f32.mrf.mxu0
  %1618 = vmatprep.mubr.f32.mxu0 0.0
  %v1619 = vand.u32 %v1532, 4294901760
  %v1620 = vsub.f32 %v1532, %v1619
  %v1621 = vand.u32 %v1620, 4294901760
  %v1622 = vsub.f32 %v1620, %v1621
  %v1623 = vand.u32 %v1622, 4294901760
  %1624 = vmatmul.mubr.f32.gmra.mxu0 %v1623
  %v1625 = vpop.f32.mrf.mxu0
  %v1626 = vadd.f32 %v1516, %v1625
  %v1627 = vpop.f32.mrf.mxu0
  %1628 = vmatprep.mubr.f32.mxu0 0.0
  %v1629 = vand.u32 %v1535, 4294901760
  %v1630 = vsub.f32 %v1535, %v1629
  %v1631 = vand.u32 %v1630, 4294901760
  %v1632 = vsub.f32 %v1630, %v1631
  %v1633 = vand.u32 %v1632, 4294901760
  %1634 = vmatmul.mubr.f32.gmra.mxu0 %v1633
  %v1635 = vpop.f32.mrf.mxu0
  %v1636 = vadd.f32 %v1521, %v1635
  %v1637 = vpop.f32.mrf.mxu0
  %1638 = vmatprep.mubr.f32.mxu0 0.0
  %v1639 = vand.u32 %v1538, 4294901760
  %v1640 = vsub.f32 %v1538, %v1639
  %v1641 = vand.u32 %v1640, 4294901760
  %v1642 = vsub.f32 %v1640, %v1641
  %v1643 = vand.u32 %v1642, 4294901760
  %1644 = vmatmul.mubr.f32.gmra.mxu0 %v1643
  %v1645 = vpop.f32.mrf.mxu0
  %v1646 = vadd.f32 %v1526, %v1645
  %v1647 = vpop.f32.mrf.mxu0
  %1648 = vdwg.mxu0
  %1649 = vmatprep.subr.mxu0 0.0
  %1650 = vmatpush1.msra.mxu0 0.0
  %1651 = vmatprep.subr.mxu0 0.0
  %1652 = vmatpush1.msra.mxu0 0.0
  %1653 = vmatprep.subr.mxu0 0.0
  %1654 = vmatpush1.msra.mxu0 0.0
  %1655 = vmatprep.subr.mxu0 0.0
  %1656 = vmatpush1.msra.mxu0 0.0
  %1657 = vmatprep.subr.mxu0 0.0
  %1658 = vmatpush1.msra.mxu0 0.0
  %1659 = vmatprep.subr.mxu0 0.0
  %1660 = vmatpush1.msra.mxu0 0.0
  %1661 = vmatprep.subr.mxu0 0.0
  %1662 = vmatpush1.msra.mxu0 0.0
  %1663 = vmatprep.subr.mxu0 0.0
  %1664 = vmatpush1.msra.mxu0 0.0
  %1665 = vmatprep.subr.mxu0 0.0
  %1666 = vmatpush1.msra.mxu0 0.0
  %1667 = vmatprep.subr.mxu0 0.0
  %1668 = vmatpush1.msra.mxu0 0.0
  %1669 = vmatprep.subr.mxu0 0.0
  %1670 = vmatpush1.msra.mxu0 0.0
  %1671 = vmatprep.subr.mxu0 0.0
  %1672 = vmatpush1.msra.mxu0 0.0
  %1673 = vmatprep.subr.mxu0 0.0
  %v1674 = vand.u32 %v1499, 4294901760
  %v1675 = vsub.f32 %v1499, %v1674
  %v1676 = vand.u32 %v1675, 4294901760
  %v1677 = vsub.f32 %v1675, %v1676
  %v1678 = vand.u32 %v1677, 4294901760
  %1679 = vmatpush1.msra.mxu0 %v1678
  %1680 = vmatprep.subr.mxu0 0.0
  %v1681 = vand.u32 %v1498, 4294901760
  %v1682 = vsub.f32 %v1498, %v1681
  %v1683 = vand.u32 %v1682, 4294901760
  %v1684 = vsub.f32 %v1682, %v1683
  %v1685 = vand.u32 %v1684, 4294901760
  %1686 = vmatpush1.msra.mxu0 %v1685
  %1687 = vmatprep.subr.mxu0 0.0
  %v1688 = vand.u32 %v1497, 4294901760
  %v1689 = vsub.f32 %v1497, %v1688
  %v1690 = vand.u32 %v1689, 4294901760
  %v1691 = vsub.f32 %v1689, %v1690
  %v1692 = vand.u32 %v1691, 4294901760
  %1693 = vmatpush1.msra.mxu0 %v1692
  %1694 = vmatprep.subr.mxu0 0.0
  %v1695 = vand.u32 %v1496, 4294901760
  %v1696 = vsub.f32 %v1496, %v1695
  %v1697 = vand.u32 %v1696, 4294901760
  %v1698 = vsub.f32 %v1696, %v1697
  %v1699 = vand.u32 %v1698, 4294901760
  %1700 = vmatpush1.msra.mxu0 %v1699
  %1701 = vmatprep.subr.mxu0 0.0
  %1702 = vmatpush2.msra.mxu0 0.0
  %1703 = vmatprep.subr.mxu0 0.0
  %1704 = vmatpush2.msra.mxu0 0.0
  %1705 = vmatprep.subr.mxu0 0.0
  %1706 = vmatpush2.msra.mxu0 0.0
  %1707 = vmatprep.subr.mxu0 0.0
  %1708 = vmatpush2.msra.mxu0 0.0
  %1709 = vmatprep.subr.mxu0 0.0
  %1710 = vmatpush2.msra.mxu0 0.0
  %1711 = vmatprep.subr.mxu0 0.0
  %1712 = vmatpush2.msra.mxu0 0.0
  %1713 = vmatprep.subr.mxu0 0.0
  %1714 = vmatpush2.msra.mxu0 0.0
  %1715 = vmatprep.subr.mxu0 0.0
  %1716 = vmatpush2.msra.mxu0 0.0
  %1717 = vmatprep.subr.mxu0 0.0
  %1718 = vmatpush2.msra.mxu0 0.0
  %1719 = vmatprep.subr.mxu0 0.0
  %1720 = vmatpush2.msra.mxu0 0.0
  %1721 = vmatprep.subr.mxu0 0.0
  %1722 = vmatpush2.msra.mxu0 0.0
  %1723 = vmatprep.subr.mxu0 0.0
  %1724 = vmatpush2.msra.mxu0 0.0
  %1725 = vmatprep.subr.mxu0 0.0
  %1726 = vmatpush2.msra.mxu0 0.0
  %1727 = vmatprep.subr.mxu0 0.0
  %1728 = vmatpush2.msra.mxu0 0.0
  %1729 = vmatprep.subr.mxu0 0.0
  %1730 = vmatpush2.msra.mxu0 0.0
  %1731 = vmatprep.subr.mxu0 0.0
  %1732 = vmatpush2.msra.mxu0 0.0
  %1733 = vmatprep.mubr.f32.mxu0 0.0
  %v1734 = vand.u32 %v1529, 4294901760
  %1735 = vmatmul.mubr.f32.gmra.mxu0 %v1734
  %v1736 = vpop.f32.mrf.mxu0
  %v1737 = vadd.f32 %v1616, %v1736
  %v1738 = vpop.f32.mrf.mxu0
  %1739 = vmatprep.mubr.f32.mxu0 0.0
  %v1740 = vand.u32 %v1532, 4294901760
  %1741 = vmatmul.mubr.f32.gmra.mxu0 %v1740
  %v1742 = vpop.f32.mrf.mxu0
  %v1743 = vadd.f32 %v1626, %v1742
  %v1744 = vpop.f32.mrf.mxu0
  %1745 = vmatprep.mubr.f32.mxu0 0.0
  %v1746 = vand.u32 %v1535, 4294901760
  %1747 = vmatmul.mubr.f32.gmra.mxu0 %v1746
  %v1748 = vpop.f32.mrf.mxu0
  %v1749 = vadd.f32 %v1636, %v1748
  %v1750 = vpop.f32.mrf.mxu0
  %1751 = vmatprep.mubr.f32.mxu0 0.0
  %v1752 = vand.u32 %v1538, 4294901760
  %1753 = vmatmul.mubr.f32.gmra.mxu0 %v1752
  %v1754 = vpop.f32.mrf.mxu0
  %v1755 = vadd.f32 %v1646, %v1754
  %v1756 = vpop.f32.mrf.mxu0
  %1757 = vdwg.mxu0
  %1758 = vmatprep.subr.mxu0 0.0
  %1759 = vmatpush1.msra.mxu0 0.0
  %1760 = vmatprep.subr.mxu0 0.0
  %1761 = vmatpush1.msra.mxu0 0.0
  %1762 = vmatprep.subr.mxu0 0.0
  %1763 = vmatpush1.msra.mxu0 0.0
  %1764 = vmatprep.subr.mxu0 0.0
  %1765 = vmatpush1.msra.mxu0 0.0
  %1766 = vmatprep.subr.mxu0 0.0
  %1767 = vmatpush1.msra.mxu0 0.0
  %1768 = vmatprep.subr.mxu0 0.0
  %1769 = vmatpush1.msra.mxu0 0.0
  %1770 = vmatprep.subr.mxu0 0.0
  %1771 = vmatpush1.msra.mxu0 0.0
  %1772 = vmatprep.subr.mxu0 0.0
  %1773 = vmatpush1.msra.mxu0 0.0
  %1774 = vmatprep.subr.mxu0 0.0
  %1775 = vmatpush1.msra.mxu0 0.0
  %1776 = vmatprep.subr.mxu0 0.0
  %1777 = vmatpush1.msra.mxu0 0.0
  %1778 = vmatprep.subr.mxu0 0.0
  %1779 = vmatpush1.msra.mxu0 0.0
  %1780 = vmatprep.subr.mxu0 0.0
  %1781 = vmatpush1.msra.mxu0 0.0
  %1782 = vmatprep.subr.mxu0 0.0
  %v1783 = vand.u32 %v1499, 4294901760
  %v1784 = vsub.f32 %v1499, %v1783
  %1785 = vmatpush1.msra.mxu0 %v1784
  %1786 = vmatprep.subr.mxu0 0.0
  %v1787 = vand.u32 %v1498, 4294901760
  %v1788 = vsub.f32 %v1498, %v1787
  %1789 = vmatpush1.msra.mxu0 %v1788
  %1790 = vmatprep.subr.mxu0 0.0
  %v1791 = vand.u32 %v1497, 4294901760
  %v1792 = vsub.f32 %v1497, %v1791
  %1793 = vmatpush1.msra.mxu0 %v1792
  %1794 = vmatprep.subr.mxu0 0.0
  %v1795 = vand.u32 %v1496, 4294901760
  %v1796 = vsub.f32 %v1496, %v1795
  %1797 = vmatpush1.msra.mxu0 %v1796
  %1798 = vmatprep.subr.mxu0 0.0
  %1799 = vmatpush2.msra.mxu0 0.0
  %1800 = vmatprep.subr.mxu0 0.0
  %1801 = vmatpush2.msra.mxu0 0.0
  %1802 = vmatprep.subr.mxu0 0.0
  %1803 = vmatpush2.msra.mxu0 0.0
  %1804 = vmatprep.subr.mxu0 0.0
  %1805 = vmatpush2.msra.mxu0 0.0
  %1806 = vmatprep.subr.mxu0 0.0
  %1807 = vmatpush2.msra.mxu0 0.0
  %1808 = vmatprep.subr.mxu0 0.0
  %1809 = vmatpush2.msra.mxu0 0.0
  %1810 = vmatprep.subr.mxu0 0.0
  %1811 = vmatpush2.msra.mxu0 0.0
  %1812 = vmatprep.subr.mxu0 0.0
  %1813 = vmatpush2.msra.mxu0 0.0
  %1814 = vmatprep.subr.mxu0 0.0
  %1815 = vmatpush2.msra.mxu0 0.0
  %1816 = vmatprep.subr.mxu0 0.0
  %1817 = vmatpush2.msra.mxu0 0.0
  %1818 = vmatprep.subr.mxu0 0.0
  %1819 = vmatpush2.msra.mxu0 0.0
  %1820 = vmatprep.subr.mxu0 0.0
  %1821 = vmatpush2.msra.mxu0 0.0
  %1822 = vmatprep.subr.mxu0 0.0
  %1823 = vmatpush2.msra.mxu0 0.0
  %1824 = vmatprep.subr.mxu0 0.0
  %1825 = vmatpush2.msra.mxu0 0.0
  %1826 = vmatprep.subr.mxu0 0.0
  %1827 = vmatpush2.msra.mxu0 0.0
  %1828 = vmatprep.subr.mxu0 0.0
  %1829 = vmatpush2.msra.mxu0 0.0
  %1830 = vmatprep.mubr.f32.mxu0 0.0
  %v1831 = vand.u32 %v1529, 4294901760
  %v1832 = vsub.f32 %v1529, %v1831
  %1833 = vmatmul.mubr.f32.gmra.mxu0 %v1832
  %v1834 = vpop.f32.mrf.mxu0
  %v1835 = vadd.f32 %v1737, %v1834
  %v1836 = vpop.f32.mrf.mxu0
  %1837 = vmatprep.mubr.f32.mxu0 0.0
  %v1838 = vand.u32 %v1532, 4294901760
  %v1839 = vsub.f32 %v1532, %v1838
  %1840 = vmatmul.mubr.f32.gmra.mxu0 %v1839
  %v1841 = vpop.f32.mrf.mxu0
  %v1842 = vadd.f32 %v1743, %v1841
  %v1843 = vpop.f32.mrf.mxu0
  %1844 = vmatprep.mubr.f32.mxu0 0.0
  %v1845 = vand.u32 %v1535, 4294901760
  %v1846 = vsub.f32 %v1535, %v1845
  %1847 = vmatmul.mubr.f32.gmra.mxu0 %v1846
  %v1848 = vpop.f32.mrf.mxu0
  %v1849 = vadd.f32 %v1749, %v1848
  %v1850 = vpop.f32.mrf.mxu0
  %1851 = vmatprep.mubr.f32.mxu0 0.0
  %v1852 = vand.u32 %v1538, 4294901760
  %v1853 = vsub.f32 %v1538, %v1852
  %1854 = vmatmul.mubr.f32.gmra.mxu0 %v1853
  %v1855 = vpop.f32.mrf.mxu0
  %v1856 = vadd.f32 %v1755, %v1855
  %v1857 = vpop.f32.mrf.mxu0
  %1858 = vdwg.mxu0
  %1859 = vmatprep.subr.mxu0 0.0
  %1860 = vmatpush1.msra.mxu0 0.0
  %1861 = vmatprep.subr.mxu0 0.0
  %1862 = vmatpush1.msra.mxu0 0.0
  %1863 = vmatprep.subr.mxu0 0.0
  %1864 = vmatpush1.msra.mxu0 0.0
  %1865 = vmatprep.subr.mxu0 0.0
  %1866 = vmatpush1.msra.mxu0 0.0
  %1867 = vmatprep.subr.mxu0 0.0
  %1868 = vmatpush1.msra.mxu0 0.0
  %1869 = vmatprep.subr.mxu0 0.0
  %1870 = vmatpush1.msra.mxu0 0.0
  %1871 = vmatprep.subr.mxu0 0.0
  %1872 = vmatpush1.msra.mxu0 0.0
  %1873 = vmatprep.subr.mxu0 0.0
  %1874 = vmatpush1.msra.mxu0 0.0
  %1875 = vmatprep.subr.mxu0 0.0
  %1876 = vmatpush1.msra.mxu0 0.0
  %1877 = vmatprep.subr.mxu0 0.0
  %1878 = vmatpush1.msra.mxu0 0.0
  %1879 = vmatprep.subr.mxu0 0.0
  %1880 = vmatpush1.msra.mxu0 0.0
  %1881 = vmatprep.subr.mxu0 0.0
  %1882 = vmatpush1.msra.mxu0 0.0
  %1883 = vmatprep.subr.mxu0 0.0
  %v1884 = vand.u32 %v1499, 4294901760
  %1885 = vmatpush1.msra.mxu0 %v1884
  %1886 = vmatprep.subr.mxu0 0.0
  %v1887 = vand.u32 %v1498, 4294901760
  %1888 = vmatpush1.msra.mxu0 %v1887
  %1889 = vmatprep.subr.mxu0 0.0
  %v1890 = vand.u32 %v1497, 4294901760
  %1891 = vmatpush1.msra.mxu0 %v1890
  %1892 = vmatprep.subr.mxu0 0.0
  %v1893 = vand.u32 %v1496, 4294901760
  %1894 = vmatpush1.msra.mxu0 %v1893
  %1895 = vmatprep.subr.mxu0 0.0
  %1896 = vmatpush2.msra.mxu0 0.0
  %1897 = vmatprep.subr.mxu0 0.0
  %1898 = vmatpush2.msra.mxu0 0.0
  %1899 = vmatprep.subr.mxu0 0.0
  %1900 = vmatpush2.msra.mxu0 0.0
  %1901 = vmatprep.subr.mxu0 0.0
  %1902 = vmatpush2.msra.mxu0 0.0
  %1903 = vmatprep.subr.mxu0 0.0
  %1904 = vmatpush2.msra.mxu0 0.0
  %1905 = vmatprep.subr.mxu0 0.0
  %1906 = vmatpush2.msra.mxu0 0.0
  %1907 = vmatprep.subr.mxu0 0.0
  %1908 = vmatpush2.msra.mxu0 0.0
  %1909 = vmatprep.subr.mxu0 0.0
  %1910 = vmatpush2.msra.mxu0 0.0
  %1911 = vmatprep.subr.mxu0 0.0
  %1912 = vmatpush2.msra.mxu0 0.0
  %1913 = vmatprep.subr.mxu0 0.0
  %1914 = vmatpush2.msra.mxu0 0.0
  %1915 = vmatprep.subr.mxu0 0.0
  %1916 = vmatpush2.msra.mxu0 0.0
  %1917 = vmatprep.subr.mxu0 0.0
  %1918 = vmatpush2.msra.mxu0 0.0
  %1919 = vmatprep.subr.mxu0 0.0
  %1920 = vmatpush2.msra.mxu0 0.0
  %1921 = vmatprep.subr.mxu0 0.0
  %1922 = vmatpush2.msra.mxu0 0.0
  %1923 = vmatprep.subr.mxu0 0.0
  %1924 = vmatpush2.msra.mxu0 0.0
  %1925 = vmatprep.subr.mxu0 0.0
  %1926 = vmatpush2.msra.mxu0 0.0
  %1927 = vmatprep.mubr.f32.mxu0 0.0
  %v1928 = vand.u32 %v1529, 4294901760
  %v1929 = vsub.f32 %v1529, %v1928
  %v1930 = vand.u32 %v1929, 4294901760
  %1931 = vmatmul.mubr.f32.gmra.mxu0 %v1930
  %v1932 = vpop.f32.mrf.mxu0
  %v1933 = vadd.f32 %v1835, %v1932
  %v1934 = vpop.f32.mrf.mxu0
  %1935 = vmatprep.mubr.f32.mxu0 0.0
  %v1936 = vand.u32 %v1532, 4294901760
  %v1937 = vsub.f32 %v1532, %v1936
  %v1938 = vand.u32 %v1937, 4294901760
  %1939 = vmatmul.mubr.f32.gmra.mxu0 %v1938
  %v1940 = vpop.f32.mrf.mxu0
  %v1941 = vadd.f32 %v1842, %v1940
  %v1942 = vpop.f32.mrf.mxu0
  %1943 = vmatprep.mubr.f32.mxu0 0.0
  %v1944 = vand.u32 %v1535, 4294901760
  %v1945 = vsub.f32 %v1535, %v1944
  %v1946 = vand.u32 %v1945, 4294901760
  %1947 = vmatmul.mubr.f32.gmra.mxu0 %v1946
  %v1948 = vpop.f32.mrf.mxu0
  %v1949 = vadd.f32 %v1849, %v1948
  %v1950 = vpop.f32.mrf.mxu0
  %1951 = vmatprep.mubr.f32.mxu0 0.0
  %v1952 = vand.u32 %v1538, 4294901760
  %v1953 = vsub.f32 %v1538, %v1952
  %v1954 = vand.u32 %v1953, 4294901760
  %1955 = vmatmul.mubr.f32.gmra.mxu0 %v1954
  %v1956 = vpop.f32.mrf.mxu0
  %v1957 = vadd.f32 %v1856, %v1956
  %v1958 = vpop.f32.mrf.mxu0
  %1959 = vdwg.mxu0
  %1960 = vmatprep.subr.mxu0 0.0
  %1961 = vmatpush1.msra.mxu0 0.0
  %1962 = vmatprep.subr.mxu0 0.0
  %1963 = vmatpush1.msra.mxu0 0.0
  %1964 = vmatprep.subr.mxu0 0.0
  %1965 = vmatpush1.msra.mxu0 0.0
  %1966 = vmatprep.subr.mxu0 0.0
  %1967 = vmatpush1.msra.mxu0 0.0
  %1968 = vmatprep.subr.mxu0 0.0
  %1969 = vmatpush1.msra.mxu0 0.0
  %1970 = vmatprep.subr.mxu0 0.0
  %1971 = vmatpush1.msra.mxu0 0.0
  %1972 = vmatprep.subr.mxu0 0.0
  %1973 = vmatpush1.msra.mxu0 0.0
  %1974 = vmatprep.subr.mxu0 0.0
  %1975 = vmatpush1.msra.mxu0 0.0
  %1976 = vmatprep.subr.mxu0 0.0
  %1977 = vmatpush1.msra.mxu0 0.0
  %1978 = vmatprep.subr.mxu0 0.0
  %1979 = vmatpush1.msra.mxu0 0.0
  %1980 = vmatprep.subr.mxu0 0.0
  %1981 = vmatpush1.msra.mxu0 0.0
  %1982 = vmatprep.subr.mxu0 0.0
  %1983 = vmatpush1.msra.mxu0 0.0
  %1984 = vmatprep.subr.mxu0 0.0
  %v1985 = vand.u32 %v1499, 4294901760
  %v1986 = vsub.f32 %v1499, %v1985
  %v1987 = vand.u32 %v1986, 4294901760
  %1988 = vmatpush1.msra.mxu0 %v1987
  %1989 = vmatprep.subr.mxu0 0.0
  %v1990 = vand.u32 %v1498, 4294901760
  %v1991 = vsub.f32 %v1498, %v1990
  %v1992 = vand.u32 %v1991, 4294901760
  %1993 = vmatpush1.msra.mxu0 %v1992
  %1994 = vmatprep.subr.mxu0 0.0
  %v1995 = vand.u32 %v1497, 4294901760
  %v1996 = vsub.f32 %v1497, %v1995
  %v1997 = vand.u32 %v1996, 4294901760
  %1998 = vmatpush1.msra.mxu0 %v1997
  %1999 = vmatprep.subr.mxu0 0.0
  %v2000 = vand.u32 %v1496, 4294901760
  %v2001 = vsub.f32 %v1496, %v2000
  %v2002 = vand.u32 %v2001, 4294901760
  %2003 = vmatpush1.msra.mxu0 %v2002
  %2004 = vmatprep.subr.mxu0 0.0
  %2005 = vmatpush2.msra.mxu0 0.0
  %2006 = vmatprep.subr.mxu0 0.0
  %2007 = vmatpush2.msra.mxu0 0.0
  %2008 = vmatprep.subr.mxu0 0.0
  %2009 = vmatpush2.msra.mxu0 0.0
  %2010 = vmatprep.subr.mxu0 0.0
  %2011 = vmatpush2.msra.mxu0 0.0
  %2012 = vmatprep.subr.mxu0 0.0
  %2013 = vmatpush2.msra.mxu0 0.0
  %2014 = vmatprep.subr.mxu0 0.0
  %2015 = vmatpush2.msra.mxu0 0.0
  %2016 = vmatprep.subr.mxu0 0.0
  %2017 = vmatpush2.msra.mxu0 0.0
  %2018 = vmatprep.subr.mxu0 0.0
  %2019 = vmatpush2.msra.mxu0 0.0
  %2020 = vmatprep.subr.mxu0 0.0
  %2021 = vmatpush2.msra.mxu0 0.0
  %2022 = vmatprep.subr.mxu0 0.0
  %2023 = vmatpush2.msra.mxu0 0.0
  %2024 = vmatprep.subr.mxu0 0.0
  %2025 = vmatpush2.msra.mxu0 0.0
  %2026 = vmatprep.subr.mxu0 0.0
  %2027 = vmatpush2.msra.mxu0 0.0
  %2028 = vmatprep.subr.mxu0 0.0
  %2029 = vmatpush2.msra.mxu0 0.0
  %2030 = vmatprep.subr.mxu0 0.0
  %2031 = vmatpush2.msra.mxu0 0.0
  %2032 = vmatprep.subr.mxu0 0.0
  %2033 = vmatpush2.msra.mxu0 0.0
  %2034 = vmatprep.subr.mxu0 0.0
  %2035 = vmatpush2.msra.mxu0 0.0
  %2036 = vmatprep.mubr.f32.mxu0 0.0
  %v2037 = vand.u32 %v1529, 4294901760
  %2038 = vmatmul.mubr.f32.gmra.mxu0 %v2037
  %v2039 = vpop.f32.mrf.mxu0
  %v2040 = vadd.f32 %v1933, %v2039
  %v2041 = vpop.f32.mrf.mxu0
  %2042 = vmatprep.mubr.f32.mxu0 0.0
  %v2043 = vand.u32 %v1532, 4294901760
  %2044 = vmatmul.mubr.f32.gmra.mxu0 %v2043
  %v2045 = vpop.f32.mrf.mxu0
  %v2046 = vadd.f32 %v1941, %v2045
  %v2047 = vpop.f32.mrf.mxu0
  %2048 = vmatprep.mubr.f32.mxu0 0.0
  %v2049 = vand.u32 %v1535, 4294901760
  %2050 = vmatmul.mubr.f32.gmra.mxu0 %v2049
  %v2051 = vpop.f32.mrf.mxu0
  %v2052 = vadd.f32 %v1949, %v2051
  %v2053 = vpop.f32.mrf.mxu0
  %2054 = vmatprep.mubr.f32.mxu0 0.0
  %v2055 = vand.u32 %v1538, 4294901760
  %2056 = vmatmul.mubr.f32.gmra.mxu0 %v2055
  %v2057 = vpop.f32.mrf.mxu0
  %v2058 = vadd.f32 %v1957, %v2057
  %v2059 = vpop.f32.mrf.mxu0
  %2060 = vdwg.mxu0
  %2061 = vmatprep.subr.mxu0 0.0
  %2062 = vmatpush1.msra.mxu0 0.0
  %2063 = vmatprep.subr.mxu0 0.0
  %2064 = vmatpush1.msra.mxu0 0.0
  %2065 = vmatprep.subr.mxu0 0.0
  %2066 = vmatpush1.msra.mxu0 0.0
  %2067 = vmatprep.subr.mxu0 0.0
  %2068 = vmatpush1.msra.mxu0 0.0
  %2069 = vmatprep.subr.mxu0 0.0
  %2070 = vmatpush1.msra.mxu0 0.0
  %2071 = vmatprep.subr.mxu0 0.0
  %2072 = vmatpush1.msra.mxu0 0.0
  %2073 = vmatprep.subr.mxu0 0.0
  %2074 = vmatpush1.msra.mxu0 0.0
  %2075 = vmatprep.subr.mxu0 0.0
  %2076 = vmatpush1.msra.mxu0 0.0
  %2077 = vmatprep.subr.mxu0 0.0
  %2078 = vmatpush1.msra.mxu0 0.0
  %2079 = vmatprep.subr.mxu0 0.0
  %2080 = vmatpush1.msra.mxu0 0.0
  %2081 = vmatprep.subr.mxu0 0.0
  %2082 = vmatpush1.msra.mxu0 0.0
  %2083 = vmatprep.subr.mxu0 0.0
  %2084 = vmatpush1.msra.mxu0 0.0
  %2085 = vmatprep.subr.mxu0 0.0
  %v2086 = vand.u32 %v1499, 4294901760
  %2087 = vmatpush1.msra.mxu0 %v2086
  %2088 = vmatprep.subr.mxu0 0.0
  %v2089 = vand.u32 %v1498, 4294901760
  %2090 = vmatpush1.msra.mxu0 %v2089
  %2091 = vmatprep.subr.mxu0 0.0
  %v2092 = vand.u32 %v1497, 4294901760
  %2093 = vmatpush1.msra.mxu0 %v2092
  %2094 = vmatprep.subr.mxu0 0.0
  %v2095 = vand.u32 %v1496, 4294901760
  %2096 = vmatpush1.msra.mxu0 %v2095
  %2097 = vmatprep.subr.mxu0 0.0
  %2098 = vmatpush2.msra.mxu0 0.0
  %2099 = vmatprep.subr.mxu0 0.0
  %2100 = vmatpush2.msra.mxu0 0.0
  %2101 = vmatprep.subr.mxu0 0.0
  %2102 = vmatpush2.msra.mxu0 0.0
  %2103 = vmatprep.subr.mxu0 0.0
  %2104 = vmatpush2.msra.mxu0 0.0
  %2105 = vmatprep.subr.mxu0 0.0
  %2106 = vmatpush2.msra.mxu0 0.0
  %2107 = vmatprep.subr.mxu0 0.0
  %2108 = vmatpush2.msra.mxu0 0.0
  %2109 = vmatprep.subr.mxu0 0.0
  %2110 = vmatpush2.msra.mxu0 0.0
  %2111 = vmatprep.subr.mxu0 0.0
  %2112 = vmatpush2.msra.mxu0 0.0
  %2113 = vmatprep.subr.mxu0 0.0
  %2114 = vmatpush2.msra.mxu0 0.0
  %2115 = vmatprep.subr.mxu0 0.0
  %2116 = vmatpush2.msra.mxu0 0.0
  %2117 = vmatprep.subr.mxu0 0.0
  %2118 = vmatpush2.msra.mxu0 0.0
  %2119 = vmatprep.subr.mxu0 0.0
  %2120 = vmatpush2.msra.mxu0 0.0
  %2121 = vmatprep.subr.mxu0 0.0
  %2122 = vmatpush2.msra.mxu0 0.0
  %2123 = vmatprep.subr.mxu0 0.0
  %2124 = vmatpush2.msra.mxu0 0.0
  %2125 = vmatprep.subr.mxu0 0.0
  %2126 = vmatpush2.msra.mxu0 0.0
  %2127 = vmatprep.subr.mxu0 0.0
  %2128 = vmatpush2.msra.mxu0 0.0
  %2129 = vmatprep.mubr.f32.mxu0 0.0
  %v2130 = vand.u32 %v1529, 4294901760
  %2131 = vmatmul.mubr.f32.gmra.mxu0 %v2130
  %v2132 = vpop.f32.mrf.mxu0
  %v2133 = vadd.f32 %v2040, %v2132
  %v2134 = vpop.f32.mrf.mxu0
  %2135 = vmatprep.mubr.f32.mxu0 0.0
  %v2136 = vand.u32 %v1532, 4294901760
  %2137 = vmatmul.mubr.f32.gmra.mxu0 %v2136
  %v2138 = vpop.f32.mrf.mxu0
  %v2139 = vadd.f32 %v2046, %v2138
  %v2140 = vpop.f32.mrf.mxu0
  %2141 = vmatprep.mubr.f32.mxu0 0.0
  %v2142 = vand.u32 %v1535, 4294901760
  %2143 = vmatmul.mubr.f32.gmra.mxu0 %v2142
  %v2144 = vpop.f32.mrf.mxu0
  %v2145 = vadd.f32 %v2052, %v2144
  %v2146 = vpop.f32.mrf.mxu0
  %2147 = vmatprep.mubr.f32.mxu0 0.0
  %v2148 = vand.u32 %v1538, 4294901760
  %2149 = vmatmul.mubr.f32.gmra.mxu0 %v2148
  %v2150 = vpop.f32.mrf.mxu0
  %v2151 = vadd.f32 %v2058, %v2150
  %v2152 = vpop.f32.mrf.mxu0
  %2153 = vdwg.mxu0
  %v2154 = vmul.f32 %v2133, %v2133
  %v2155 = vmul.f32 %v2139, %v2139
  %v2156 = vmul.f32 %v2145, %v2145
  %v2157 = vmul.f32 %v2151, %v2151
  %v2158 = vmul.f32 %v2133, %v2154
  %v2159 = vmul.f32 %v2139, %v2155
  %v2160 = vmul.f32 %v2145, %v2156
  %v2161 = vmul.f32 %v2151, %v2157
  %v2162 = vmul.f32 %v2158, 0.044715
  %v2163 = vmul.f32 %v2159, 0.044715
  %v2164 = vmul.f32 %v2160, 0.044715
  %v2165 = vmul.f32 %v2161, 0.044715
  %v2166 = vadd.f32 %v2133, %v2162
  %v2167 = vadd.f32 %v2139, %v2163
  %v2168 = vadd.f32 %v2145, %v2164
  %v2169 = vadd.f32 %v2151, %v2165
  %v2170 = vmul.f32 %v2166, 0.7978846
  %v2171 = vmul.f32 %v2167, 0.7978846
  %v2172 = vmul.f32 %v2168, 0.7978846
  %v2173 = vmul.f32 %v2169, 0.7978846
  %v2174 = vtanh.pop %v2170
  %v2175 = vtanh.pop %v2171
  %v2176 = vtanh.pop %v2172
  %v2177 = vtanh.pop %v2173
  %v2178 = vadd.f32 %v2174, 1.0
  %v2179 = vadd.f32 %v2175, 1.0
  %v2180 = vadd.f32 %v2176, 1.0
  %v2181 = vadd.f32 %v2177, 1.0
  %v2182 = vmul.f32 %v2178, 0.5
  %v2183 = vmul.f32 %v2179, 0.5
  %v2184 = vmul.f32 %v2180, 0.5
  %v2185 = vmul.f32 %v2181, 0.5
  %v2186 = vmul.f32 %v2133, %v2182
  %v2187 = vmul.f32 %v2139, %v2183
  %v2188 = vmul.f32 %v2145, %v2184
  %v2189 = vmul.f32 %v2151, %v2185
  %v2190 = vld [vmem:[%s7] sm:$0xff]
  %v2191 = vld [vmem:[%s7 + $0x8] sm:$0xff]
  %v2192 = vld [vmem:[%s8] sm:$0xff]
  %v2193 = vld [vmem:[%s8 + $0x8] sm:$0xff]
  %2195 = vset.pattern.permute.xlu0 0
  %2196 = vperm.xlu0 %2195, %v2192
  %v2197 = vpop.permute.xlu0 %2196
  %2200 = vset.pattern.permute.xlu0 0
  %2201 = vperm.xlu0 %2200, %v2193
  %v2202 = vpop.permute.xlu0 %2201
  %v2205 = vsel %vm837, %v2190, 0
  %v2208 = vsel %vm837, %v2191, 0
  %2210 = vmatprep.subr.mxu0 0.0
  %2211 = vmatpush1.msra.mxu0 0.0
  %2212 = vmatprep.subr.mxu0 0.0
  %2213 = vmatpush1.msra.mxu0 0.0
  %2214 = vmatprep.subr.mxu0 0.0
  %2215 = vmatpush1.msra.mxu0 0.0
  %2216 = vmatprep.subr.mxu0 0.0
  %2217 = vmatpush1.msra.mxu0 0.0
  %2218 = vmatprep.subr.mxu0 0.0
  %2219 = vmatpush1.msra.mxu0 0.0
  %2220 = vmatprep.subr.mxu0 0.0
  %2221 = vmatpush1.msra.mxu0 0.0
  %2222 = vmatprep.subr.mxu0 0.0
  %2223 = vmatpush1.msra.mxu0 0.0
  %2224 = vmatprep.subr.mxu0 0.0
  %2225 = vmatpush1.msra.mxu0 0.0
  %2226 = vmatprep.subr.mxu0 0.0
  %2227 = vmatpush1.msra.mxu0 0.0
  %2228 = vmatprep.subr.mxu0 0.0
  %2229 = vmatpush1.msra.mxu0 0.0
  %2230 = vmatprep.subr.mxu0 0.0
  %2231 = vmatpush1.msra.mxu0 0.0
  %2232 = vmatprep.subr.mxu0 0.0
  %2233 = vmatpush1.msra.mxu0 0.0
  %2234 = vmatprep.subr.mxu0 0.0
  %v2235 = vand.u32 %v2189, 4294901760
  %2236 = vmatpush1.msra.mxu0 %v2235
  %2237 = vmatprep.subr.mxu0 0.0
  %v2238 = vand.u32 %v2188, 4294901760
  %2239 = vmatpush1.msra.mxu0 %v2238
  %2240 = vmatprep.subr.mxu0 0.0
  %v2241 = vand.u32 %v2187, 4294901760
  %2242 = vmatpush1.msra.mxu0 %v2241
  %2243 = vmatprep.subr.mxu0 0.0
  %v2244 = vand.u32 %v2186, 4294901760
  %2245 = vmatpush1.msra.mxu0 %v2244
  %2246 = vmatprep.subr.mxu0 0.0
  %2247 = vmatpush2.msra.mxu0 0.0
  %2248 = vmatprep.subr.mxu0 0.0
  %2249 = vmatpush2.msra.mxu0 0.0
  %2250 = vmatprep.subr.mxu0 0.0
  %2251 = vmatpush2.msra.mxu0 0.0
  %2252 = vmatprep.subr.mxu0 0.0
  %2253 = vmatpush2.msra.mxu0 0.0
  %2254 = vmatprep.subr.mxu0 0.0
  %2255 = vmatpush2.msra.mxu0 0.0
  %2256 = vmatprep.subr.mxu0 0.0
  %2257 = vmatpush2.msra.mxu0 0.0
  %2258 = vmatprep.subr.mxu0 0.0
  %2259 = vmatpush2.msra.mxu0 0.0
  %2260 = vmatprep.subr.mxu0 0.0
  %2261 = vmatpush2.msra.mxu0 0.0
  %2262 = vmatprep.subr.mxu0 0.0
  %2263 = vmatpush2.msra.mxu0 0.0
  %2264 = vmatprep.subr.mxu0 0.0
  %2265 = vmatpush2.msra.mxu0 0.0
  %2266 = vmatprep.subr.mxu0 0.0
  %2267 = vmatpush2.msra.mxu0 0.0
  %2268 = vmatprep.subr.mxu0 0.0
  %2269 = vmatpush2.msra.mxu0 0.0
  %2270 = vmatprep.subr.mxu0 0.0
  %2271 = vmatpush2.msra.mxu0 0.0
  %2272 = vmatprep.subr.mxu0 0.0
  %2273 = vmatpush2.msra.mxu0 0.0
  %2274 = vmatprep.subr.mxu0 0.0
  %2275 = vmatpush2.msra.mxu0 0.0
  %2276 = vmatprep.subr.mxu0 0.0
  %2277 = vmatpush2.msra.mxu0 0.0
  %2278 = vmatprep.mubr.f32.mxu0 0.0
  %v2279 = vand.u32 %v2205, 4294901760
  %v2280 = vsub.f32 %v2205, %v2279
  %v2281 = vand.u32 %v2280, 4294901760
  %v2282 = vsub.f32 %v2280, %v2281
  %v2283 = vand.u32 %v2282, 4294901760
  %2284 = vmatmul.mubr.f32.gmra.mxu0 %v2283
  %v2285 = vpop.f32.mrf.mxu0
  %v2286 = vadd.f32 %v2197, %v2285
  %v2287 = vpop.f32.mrf.mxu0
  %2288 = vmatprep.mubr.f32.mxu0 0.0
  %v2289 = vand.u32 %v2208, 4294901760
  %v2290 = vsub.f32 %v2208, %v2289
  %v2291 = vand.u32 %v2290, 4294901760
  %v2292 = vsub.f32 %v2290, %v2291
  %v2293 = vand.u32 %v2292, 4294901760
  %2294 = vmatmul.mubr.f32.gmra.mxu0 %v2293
  %v2295 = vpop.f32.mrf.mxu0
  %v2296 = vadd.f32 %v2202, %v2295
  %v2297 = vpop.f32.mrf.mxu0
  %2298 = vdwg.mxu0
  %2299 = vmatprep.subr.mxu0 0.0
  %2300 = vmatpush1.msra.mxu0 0.0
  %2301 = vmatprep.subr.mxu0 0.0
  %2302 = vmatpush1.msra.mxu0 0.0
  %2303 = vmatprep.subr.mxu0 0.0
  %2304 = vmatpush1.msra.mxu0 0.0
  %2305 = vmatprep.subr.mxu0 0.0
  %2306 = vmatpush1.msra.mxu0 0.0
  %2307 = vmatprep.subr.mxu0 0.0
  %2308 = vmatpush1.msra.mxu0 0.0
  %2309 = vmatprep.subr.mxu0 0.0
  %2310 = vmatpush1.msra.mxu0 0.0
  %2311 = vmatprep.subr.mxu0 0.0
  %2312 = vmatpush1.msra.mxu0 0.0
  %2313 = vmatprep.subr.mxu0 0.0
  %2314 = vmatpush1.msra.mxu0 0.0
  %2315 = vmatprep.subr.mxu0 0.0
  %2316 = vmatpush1.msra.mxu0 0.0
  %2317 = vmatprep.subr.mxu0 0.0
  %2318 = vmatpush1.msra.mxu0 0.0
  %2319 = vmatprep.subr.mxu0 0.0
  %2320 = vmatpush1.msra.mxu0 0.0
  %2321 = vmatprep.subr.mxu0 0.0
  %2322 = vmatpush1.msra.mxu0 0.0
  %2323 = vmatprep.subr.mxu0 0.0
  %v2324 = vand.u32 %v2189, 4294901760
  %v2325 = vsub.f32 %v2189, %v2324
  %v2326 = vand.u32 %v2325, 4294901760
  %v2327 = vsub.f32 %v2325, %v2326
  %v2328 = vand.u32 %v2327, 4294901760
  %2329 = vmatpush1.msra.mxu0 %v2328
  %2330 = vmatprep.subr.mxu0 0.0
  %v2331 = vand.u32 %v2188, 4294901760
  %v2332 = vsub.f32 %v2188, %v2331
  %v2333 = vand.u32 %v2332, 4294901760
  %v2334 = vsub.f32 %v2332, %v2333
  %v2335 = vand.u32 %v2334, 4294901760
  %2336 = vmatpush1.msra.mxu0 %v2335
  %2337 = vmatprep.subr.mxu0 0.0
  %v2338 = vand.u32 %v2187, 4294901760
  %v2339 = vsub.f32 %v2187, %v2338
  %v2340 = vand.u32 %v2339, 4294901760
  %v2341 = vsub.f32 %v2339, %v2340
  %v2342 = vand.u32 %v2341, 4294901760
  %2343 = vmatpush1.msra.mxu0 %v2342
  %2344 = vmatprep.subr.mxu0 0.0
  %v2345 = vand.u32 %v2186, 4294901760
  %v2346 = vsub.f32 %v2186, %v2345
  %v2347 = vand.u32 %v2346, 4294901760
  %v2348 = vsub.f32 %v2346, %v2347
  %v2349 = vand.u32 %v2348, 4294901760
  %2350 = vmatpush1.msra.mxu0 %v2349
  %2351 = vmatprep.subr.mxu0 0.0
  %2352 = vmatpush2.msra.mxu0 0.0
  %2353 = vmatprep.subr.mxu0 0.0
  %2354 = vmatpush2.msra.mxu0 0.0
  %2355 = vmatprep.subr.mxu0 0.0
  %2356 = vmatpush2.msra.mxu0 0.0
  %2357 = vmatprep.subr.mxu0 0.0
  %2358 = vmatpush2.msra.mxu0 0.0
  %2359 = vmatprep.subr.mxu0 0.0
  %2360 = vmatpush2.msra.mxu0 0.0
  %2361 = vmatprep.subr.mxu0 0.0
  %2362 = vmatpush2.msra.mxu0 0.0
  %2363 = vmatprep.subr.mxu0 0.0
  %2364 = vmatpush2.msra.mxu0 0.0
  %2365 = vmatprep.subr.mxu0 0.0
  %2366 = vmatpush2.msra.mxu0 0.0
  %2367 = vmatprep.subr.mxu0 0.0
  %2368 = vmatpush2.msra.mxu0 0.0
  %2369 = vmatprep.subr.mxu0 0.0
  %2370 = vmatpush2.msra.mxu0 0.0
  %2371 = vmatprep.subr.mxu0 0.0
  %2372 = vmatpush2.msra.mxu0 0.0
  %2373 = vmatprep.subr.mxu0 0.0
  %2374 = vmatpush2.msra.mxu0 0.0
  %2375 = vmatprep.subr.mxu0 0.0
  %2376 = vmatpush2.msra.mxu0 0.0
  %2377 = vmatprep.subr.mxu0 0.0
  %2378 = vmatpush2.msra.mxu0 0.0
  %2379 = vmatprep.subr.mxu0 0.0
  %2380 = vmatpush2.msra.mxu0 0.0
  %2381 = vmatprep.subr.mxu0 0.0
  %2382 = vmatpush2.msra.mxu0 0.0
  %2383 = vmatprep.mubr.f32.mxu0 0.0
  %v2384 = vand.u32 %v2205, 4294901760
  %2385 = vmatmul.mubr.f32.gmra.mxu0 %v2384
  %v2386 = vpop.f32.mrf.mxu0
  %v2387 = vadd.f32 %v2286, %v2386
  %v2388 = vpop.f32.mrf.mxu0
  %2389 = vmatprep.mubr.f32.mxu0 0.0
  %v2390 = vand.u32 %v2208, 4294901760
  %2391 = vmatmul.mubr.f32.gmra.mxu0 %v2390
  %v2392 = vpop.f32.mrf.mxu0
  %v2393 = vadd.f32 %v2296, %v2392
  %v2394 = vpop.f32.mrf.mxu0
  %2395 = vdwg.mxu0
  %2396 = vmatprep.subr.mxu0 0.0
  %2397 = vmatpush1.msra.mxu0 0.0
  %2398 = vmatprep.subr.mxu0 0.0
  %2399 = vmatpush1.msra.mxu0 0.0
  %2400 = vmatprep.subr.mxu0 0.0
  %2401 = vmatpush1.msra.mxu0 0.0
  %2402 = vmatprep.subr.mxu0 0.0
  %2403 = vmatpush1.msra.mxu0 0.0
  %2404 = vmatprep.subr.mxu0 0.0
  %2405 = vmatpush1.msra.mxu0 0.0
  %2406 = vmatprep.subr.mxu0 0.0
  %2407 = vmatpush1.msra.mxu0 0.0
  %2408 = vmatprep.subr.mxu0 0.0
  %2409 = vmatpush1.msra.mxu0 0.0
  %2410 = vmatprep.subr.mxu0 0.0
  %2411 = vmatpush1.msra.mxu0 0.0
  %2412 = vmatprep.subr.mxu0 0.0
  %2413 = vmatpush1.msra.mxu0 0.0
  %2414 = vmatprep.subr.mxu0 0.0
  %2415 = vmatpush1.msra.mxu0 0.0
  %2416 = vmatprep.subr.mxu0 0.0
  %2417 = vmatpush1.msra.mxu0 0.0
  %2418 = vmatprep.subr.mxu0 0.0
  %2419 = vmatpush1.msra.mxu0 0.0
  %2420 = vmatprep.subr.mxu0 0.0
  %v2421 = vand.u32 %v2189, 4294901760
  %v2422 = vsub.f32 %v2189, %v2421
  %2423 = vmatpush1.msra.mxu0 %v2422
  %2424 = vmatprep.subr.mxu0 0.0
  %v2425 = vand.u32 %v2188, 4294901760
  %v2426 = vsub.f32 %v2188, %v2425
  %2427 = vmatpush1.msra.mxu0 %v2426
  %2428 = vmatprep.subr.mxu0 0.0
  %v2429 = vand.u32 %v2187, 4294901760
  %v2430 = vsub.f32 %v2187, %v2429
  %2431 = vmatpush1.msra.mxu0 %v2430
  %2432 = vmatprep.subr.mxu0 0.0
  %v2433 = vand.u32 %v2186, 4294901760
  %v2434 = vsub.f32 %v2186, %v2433
  %2435 = vmatpush1.msra.mxu0 %v2434
  %2436 = vmatprep.subr.mxu0 0.0
  %2437 = vmatpush2.msra.mxu0 0.0
  %2438 = vmatprep.subr.mxu0 0.0
  %2439 = vmatpush2.msra.mxu0 0.0
  %2440 = vmatprep.subr.mxu0 0.0
  %2441 = vmatpush2.msra.mxu0 0.0
  %2442 = vmatprep.subr.mxu0 0.0
  %2443 = vmatpush2.msra.mxu0 0.0
  %2444 = vmatprep.subr.mxu0 0.0
  %2445 = vmatpush2.msra.mxu0 0.0
  %2446 = vmatprep.subr.mxu0 0.0
  %2447 = vmatpush2.msra.mxu0 0.0
  %2448 = vmatprep.subr.mxu0 0.0
  %2449 = vmatpush2.msra.mxu0 0.0
  %2450 = vmatprep.subr.mxu0 0.0
  %2451 = vmatpush2.msra.mxu0 0.0
  %2452 = vmatprep.subr.mxu0 0.0
  %2453 = vmatpush2.msra.mxu0 0.0
  %2454 = vmatprep.subr.mxu0 0.0
  %2455 = vmatpush2.msra.mxu0 0.0
  %2456 = vmatprep.subr.mxu0 0.0
  %2457 = vmatpush2.msra.mxu0 0.0
  %2458 = vmatprep.subr.mxu0 0.0
  %2459 = vmatpush2.msra.mxu0 0.0
  %2460 = vmatprep.subr.mxu0 0.0
  %2461 = vmatpush2.msra.mxu0 0.0
  %2462 = vmatprep.subr.mxu0 0.0
  %2463 = vmatpush2.msra.mxu0 0.0
  %2464 = vmatprep.subr.mxu0 0.0
  %2465 = vmatpush2.msra.mxu0 0.0
  %2466 = vmatprep.subr.mxu0 0.0
  %2467 = vmatpush2.msra.mxu0 0.0
  %2468 = vmatprep.mubr.f32.mxu0 0.0
  %v2469 = vand.u32 %v2205, 4294901760
  %v2470 = vsub.f32 %v2205, %v2469
  %2471 = vmatmul.mubr.f32.gmra.mxu0 %v2470
  %v2472 = vpop.f32.mrf.mxu0
  %v2473 = vadd.f32 %v2387, %v2472
  %v2474 = vpop.f32.mrf.mxu0
  %2475 = vmatprep.mubr.f32.mxu0 0.0
  %v2476 = vand.u32 %v2208, 4294901760
  %v2477 = vsub.f32 %v2208, %v2476
  %2478 = vmatmul.mubr.f32.gmra.mxu0 %v2477
  %v2479 = vpop.f32.mrf.mxu0
  %v2480 = vadd.f32 %v2393, %v2479
  %v2481 = vpop.f32.mrf.mxu0
  %2482 = vdwg.mxu0
  %2483 = vmatprep.subr.mxu0 0.0
  %2484 = vmatpush1.msra.mxu0 0.0
  %2485 = vmatprep.subr.mxu0 0.0
  %2486 = vmatpush1.msra.mxu0 0.0
  %2487 = vmatprep.subr.mxu0 0.0
  %2488 = vmatpush1.msra.mxu0 0.0
  %2489 = vmatprep.subr.mxu0 0.0
  %2490 = vmatpush1.msra.mxu0 0.0
  %2491 = vmatprep.subr.mxu0 0.0
  %2492 = vmatpush1.msra.mxu0 0.0
  %2493 = vmatprep.subr.mxu0 0.0
  %2494 = vmatpush1.msra.mxu0 0.0
  %2495 = vmatprep.subr.mxu0 0.0
  %2496 = vmatpush1.msra.mxu0 0.0
  %2497 = vmatprep.subr.mxu0 0.0
  %2498 = vmatpush1.msra.mxu0 0.0
  %2499 = vmatprep.subr.mxu0 0.0
  %2500 = vmatpush1.msra.mxu0 0.0
  %2501 = vmatprep.subr.mxu0 0.0
  %2502 = vmatpush1.msra.mxu0 0.0
  %2503 = vmatprep.subr.mxu0 0.0
  %2504 = vmatpush1.msra.mxu0 0.0
  %2505 = vmatprep.subr.mxu0 0.0
  %2506 = vmatpush1.msra.mxu0 0.0
  %2507 = vmatprep.subr.mxu0 0.0
  %v2508 = vand.u32 %v2189, 4294901760
  %2509 = vmatpush1.msra.mxu0 %v2508
  %2510 = vmatprep.subr.mxu0 0.0
  %v2511 = vand.u32 %v2188, 4294901760
  %2512 = vmatpush1.msra.mxu0 %v2511
  %2513 = vmatprep.subr.mxu0 0.0
  %v2514 = vand.u32 %v2187, 4294901760
  %2515 = vmatpush1.msra.mxu0 %v2514
  %2516 = vmatprep.subr.mxu0 0.0
  %v2517 = vand.u32 %v2186, 4294901760
  %2518 = vmatpush1.msra.mxu0 %v2517
  %2519 = vmatprep.subr.mxu0 0.0
  %2520 = vmatpush2.msra.mxu0 0.0
  %2521 = vmatprep.subr.mxu0 0.0
  %2522 = vmatpush2.msra.mxu0 0.0
  %2523 = vmatprep.subr.mxu0 0.0
  %2524 = vmatpush2.msra.mxu0 0.0
  %2525 = vmatprep.subr.mxu0 0.0
  %2526 = vmatpush2.msra.mxu0 0.0
  %2527 = vmatprep.subr.mxu0 0.0
  %2528 = vmatpush2.msra.mxu0 0.0
  %2529 = vmatprep.subr.mxu0 0.0
  %2530 = vmatpush2.msra.mxu0 0.0
  %2531 = vmatprep.subr.mxu0 0.0
  %2532 = vmatpush2.msra.mxu0 0.0
  %2533 = vmatprep.subr.mxu0 0.0
  %2534 = vmatpush2.msra.mxu0 0.0
  %2535 = vmatprep.subr.mxu0 0.0
  %2536 = vmatpush2.msra.mxu0 0.0
  %2537 = vmatprep.subr.mxu0 0.0
  %2538 = vmatpush2.msra.mxu0 0.0
  %2539 = vmatprep.subr.mxu0 0.0
  %2540 = vmatpush2.msra.mxu0 0.0
  %2541 = vmatprep.subr.mxu0 0.0
  %2542 = vmatpush2.msra.mxu0 0.0
  %2543 = vmatprep.subr.mxu0 0.0
  %2544 = vmatpush2.msra.mxu0 0.0
  %2545 = vmatprep.subr.mxu0 0.0
  %2546 = vmatpush2.msra.mxu0 0.0
  %2547 = vmatprep.subr.mxu0 0.0
  %2548 = vmatpush2.msra.mxu0 0.0
  %2549 = vmatprep.subr.mxu0 0.0
  %2550 = vmatpush2.msra.mxu0 0.0
  %2551 = vmatprep.mubr.f32.mxu0 0.0
  %v2552 = vand.u32 %v2205, 4294901760
  %v2553 = vsub.f32 %v2205, %v2552
  %v2554 = vand.u32 %v2553, 4294901760
  %2555 = vmatmul.mubr.f32.gmra.mxu0 %v2554
  %v2556 = vpop.f32.mrf.mxu0
  %v2557 = vadd.f32 %v2473, %v2556
  %v2558 = vpop.f32.mrf.mxu0
  %2559 = vmatprep.mubr.f32.mxu0 0.0
  %v2560 = vand.u32 %v2208, 4294901760
  %v2561 = vsub.f32 %v2208, %v2560
  %v2562 = vand.u32 %v2561, 4294901760
  %2563 = vmatmul.mubr.f32.gmra.mxu0 %v2562
  %v2564 = vpop.f32.mrf.mxu0
  %v2565 = vadd.f32 %v2480, %v2564
  %v2566 = vpop.f32.mrf.mxu0
  %2567 = vdwg.mxu0
  %2568 = vmatprep.subr.mxu0 0.0
  %2569 = vmatpush1.msra.mxu0 0.0
  %2570 = vmatprep.subr.mxu0 0.0
  %2571 = vmatpush1.msra.mxu0 0.0
  %2572 = vmatprep.subr.mxu0 0.0
  %2573 = vmatpush1.msra.mxu0 0.0
  %2574 = vmatprep.subr.mxu0 0.0
  %2575 = vmatpush1.msra.mxu0 0.0
  %2576 = vmatprep.subr.mxu0 0.0
  %2577 = vmatpush1.msra.mxu0 0.0
  %2578 = vmatprep.subr.mxu0 0.0
  %2579 = vmatpush1.msra.mxu0 0.0
  %2580 = vmatprep.subr.mxu0 0.0
  %2581 = vmatpush1.msra.mxu0 0.0
  %2582 = vmatprep.subr.mxu0 0.0
  %2583 = vmatpush1.msra.mxu0 0.0
  %2584 = vmatprep.subr.mxu0 0.0
  %2585 = vmatpush1.msra.mxu0 0.0
  %2586 = vmatprep.subr.mxu0 0.0
  %2587 = vmatpush1.msra.mxu0 0.0
  %2588 = vmatprep.subr.mxu0 0.0
  %2589 = vmatpush1.msra.mxu0 0.0
  %2590 = vmatprep.subr.mxu0 0.0
  %2591 = vmatpush1.msra.mxu0 0.0
  %2592 = vmatprep.subr.mxu0 0.0
  %v2593 = vand.u32 %v2189, 4294901760
  %v2594 = vsub.f32 %v2189, %v2593
  %v2595 = vand.u32 %v2594, 4294901760
  %2596 = vmatpush1.msra.mxu0 %v2595
  %2597 = vmatprep.subr.mxu0 0.0
  %v2598 = vand.u32 %v2188, 4294901760
  %v2599 = vsub.f32 %v2188, %v2598
  %v2600 = vand.u32 %v2599, 4294901760
  %2601 = vmatpush1.msra.mxu0 %v2600
  %2602 = vmatprep.subr.mxu0 0.0
  %v2603 = vand.u32 %v2187, 4294901760
  %v2604 = vsub.f32 %v2187, %v2603
  %v2605 = vand.u32 %v2604, 4294901760
  %2606 = vmatpush1.msra.mxu0 %v2605
  %2607 = vmatprep.subr.mxu0 0.0
  %v2608 = vand.u32 %v2186, 4294901760
  %v2609 = vsub.f32 %v2186, %v2608
  %v2610 = vand.u32 %v2609, 4294901760
  %2611 = vmatpush1.msra.mxu0 %v2610
  %2612 = vmatprep.subr.mxu0 0.0
  %2613 = vmatpush2.msra.mxu0 0.0
  %2614 = vmatprep.subr.mxu0 0.0
  %2615 = vmatpush2.msra.mxu0 0.0
  %2616 = vmatprep.subr.mxu0 0.0
  %2617 = vmatpush2.msra.mxu0 0.0
  %2618 = vmatprep.subr.mxu0 0.0
  %2619 = vmatpush2.msra.mxu0 0.0
  %2620 = vmatprep.subr.mxu0 0.0
  %2621 = vmatpush2.msra.mxu0 0.0
  %2622 = vmatprep.subr.mxu0 0.0
  %2623 = vmatpush2.msra.mxu0 0.0
  %2624 = vmatprep.subr.mxu0 0.0
  %2625 = vmatpush2.msra.mxu0 0.0
  %2626 = vmatprep.subr.mxu0 0.0
  %2627 = vmatpush2.msra.mxu0 0.0
  %2628 = vmatprep.subr.mxu0 0.0
  %2629 = vmatpush2.msra.mxu0 0.0
  %2630 = vmatprep.subr.mxu0 0.0
  %2631 = vmatpush2.msra.mxu0 0.0
  %2632 = vmatprep.subr.mxu0 0.0
  %2633 = vmatpush2.msra.mxu0 0.0
  %2634 = vmatprep.subr.mxu0 0.0
  %2635 = vmatpush2.msra.mxu0 0.0
  %2636 = vmatprep.subr.mxu0 0.0
  %2637 = vmatpush2.msra.mxu0 0.0
  %2638 = vmatprep.subr.mxu0 0.0
  %2639 = vmatpush2.msra.mxu0 0.0
  %2640 = vmatprep.subr.mxu0 0.0
  %2641 = vmatpush2.msra.mxu0 0.0
  %2642 = vmatprep.subr.mxu0 0.0
  %2643 = vmatpush2.msra.mxu0 0.0
  %2644 = vmatprep.mubr.f32.mxu0 0.0
  %v2645 = vand.u32 %v2205, 4294901760
  %2646 = vmatmul.mubr.f32.gmra.mxu0 %v2645
  %v2647 = vpop.f32.mrf.mxu0
  %v2648 = vadd.f32 %v2557, %v2647
  %v2649 = vpop.f32.mrf.mxu0
  %2650 = vmatprep.mubr.f32.mxu0 0.0
  %v2651 = vand.u32 %v2208, 4294901760
  %2652 = vmatmul.mubr.f32.gmra.mxu0 %v2651
  %v2653 = vpop.f32.mrf.mxu0
  %v2654 = vadd.f32 %v2565, %v2653
  %v2655 = vpop.f32.mrf.mxu0
  %2656 = vdwg.mxu0
  %2657 = vmatprep.subr.mxu0 0.0
  %2658 = vmatpush1.msra.mxu0 0.0
  %2659 = vmatprep.subr.mxu0 0.0
  %2660 = vmatpush1.msra.mxu0 0.0
  %2661 = vmatprep.subr.mxu0 0.0
  %2662 = vmatpush1.msra.mxu0 0.0
  %2663 = vmatprep.subr.mxu0 0.0
  %2664 = vmatpush1.msra.mxu0 0.0
  %2665 = vmatprep.subr.mxu0 0.0
  %2666 = vmatpush1.msra.mxu0 0.0
  %2667 = vmatprep.subr.mxu0 0.0
  %2668 = vmatpush1.msra.mxu0 0.0
  %2669 = vmatprep.subr.mxu0 0.0
  %2670 = vmatpush1.msra.mxu0 0.0
  %2671 = vmatprep.subr.mxu0 0.0
  %2672 = vmatpush1.msra.mxu0 0.0
  %2673 = vmatprep.subr.mxu0 0.0
  %2674 = vmatpush1.msra.mxu0 0.0
  %2675 = vmatprep.subr.mxu0 0.0
  %2676 = vmatpush1.msra.mxu0 0.0
  %2677 = vmatprep.subr.mxu0 0.0
  %2678 = vmatpush1.msra.mxu0 0.0
  %2679 = vmatprep.subr.mxu0 0.0
  %2680 = vmatpush1.msra.mxu0 0.0
  %2681 = vmatprep.subr.mxu0 0.0
  %v2682 = vand.u32 %v2189, 4294901760
  %2683 = vmatpush1.msra.mxu0 %v2682
  %2684 = vmatprep.subr.mxu0 0.0
  %v2685 = vand.u32 %v2188, 4294901760
  %2686 = vmatpush1.msra.mxu0 %v2685
  %2687 = vmatprep.subr.mxu0 0.0
  %v2688 = vand.u32 %v2187, 4294901760
  %2689 = vmatpush1.msra.mxu0 %v2688
  %2690 = vmatprep.subr.mxu0 0.0
  %v2691 = vand.u32 %v2186, 4294901760
  %2692 = vmatpush1.msra.mxu0 %v2691
  %2693 = vmatprep.subr.mxu0 0.0
  %2694 = vmatpush2.msra.mxu0 0.0
  %2695 = vmatprep.subr.mxu0 0.0
  %2696 = vmatpush2.msra.mxu0 0.0
  %2697 = vmatprep.subr.mxu0 0.0
  %2698 = vmatpush2.msra.mxu0 0.0
  %2699 = vmatprep.subr.mxu0 0.0
  %2700 = vmatpush2.msra.mxu0 0.0
  %2701 = vmatprep.subr.mxu0 0.0
  %2702 = vmatpush2.msra.mxu0 0.0
  %2703 = vmatprep.subr.mxu0 0.0
  %2704 = vmatpush2.msra.mxu0 0.0
  %2705 = vmatprep.subr.mxu0 0.0
  %2706 = vmatpush2.msra.mxu0 0.0
  %2707 = vmatprep.subr.mxu0 0.0
  %2708 = vmatpush2.msra.mxu0 0.0
  %2709 = vmatprep.subr.mxu0 0.0
  %2710 = vmatpush2.msra.mxu0 0.0
  %2711 = vmatprep.subr.mxu0 0.0
  %2712 = vmatpush2.msra.mxu0 0.0
  %2713 = vmatprep.subr.mxu0 0.0
  %2714 = vmatpush2.msra.mxu0 0.0
  %2715 = vmatprep.subr.mxu0 0.0
  %2716 = vmatpush2.msra.mxu0 0.0
  %2717 = vmatprep.subr.mxu0 0.0
  %2718 = vmatpush2.msra.mxu0 0.0
  %2719 = vmatprep.subr.mxu0 0.0
  %2720 = vmatpush2.msra.mxu0 0.0
  %2721 = vmatprep.subr.mxu0 0.0
  %2722 = vmatpush2.msra.mxu0 0.0
  %2723 = vmatprep.subr.mxu0 0.0
  %2724 = vmatpush2.msra.mxu0 0.0
  %2725 = vmatprep.mubr.f32.mxu0 0.0
  %v2726 = vand.u32 %v2205, 4294901760
  %2727 = vmatmul.mubr.f32.gmra.mxu0 %v2726
  %v2728 = vpop.f32.mrf.mxu0
  %v2729 = vadd.f32 %v2648, %v2728
  %v2730 = vpop.f32.mrf.mxu0
  %2731 = vmatprep.mubr.f32.mxu0 0.0
  %v2732 = vand.u32 %v2208, 4294901760
  %2733 = vmatmul.mubr.f32.gmra.mxu0 %v2732
  %v2734 = vpop.f32.mrf.mxu0
  %v2735 = vadd.f32 %v2654, %v2734
  %v2736 = vpop.f32.mrf.mxu0
  %2737 = vdwg.mxu0
  %2738 = vxpose.xlu0.b32.start [1/16] %v2729, 128
  %2739 = vxpose.xlu0.b32.cont [2/16] %v2735, 128
  %2740 = vxpose.xlu0.b32.cont [3/16] 0.0, 128
  %2741 = vxpose.xlu0.b32.cont [4/16] 0.0, 128
  %2742 = vxpose.xlu0.b32.cont [5/16] 0.0, 128
  %2743 = vxpose.xlu0.b32.cont [6/16] 0.0, 128
  %2744 = vxpose.xlu0.b32.cont [7/16] 0.0, 128
  %2745 = vxpose.xlu0.b32.cont [8/16] 0.0, 128
  %2746 = vxpose.xlu0.b32.cont [9/16] 0.0, 128
  %2747 = vxpose.xlu0.b32.cont [10/16] 0.0, 128
  %2748 = vxpose.xlu0.b32.cont [11/16] 0.0, 128
  %2749 = vxpose.xlu0.b32.cont [12/16] 0.0, 128
  %2750 = vxpose.xlu0.b32.cont [13/16] 0.0, 128
  %2751 = vxpose.xlu0.b32.cont [14/16] 0.0, 128
  %2752 = vxpose.xlu0.b32.cont [15/16] 0.0, 128
  %2753 = vxpose.xlu0.b32.end [16/16] 0.0, 128
  %v2754 = vpop.trf.xlu0
  %v2755 = vpop.trf.xlu0
  %v2756 = vpop.trf.xlu0
  %v2757 = vpop.trf.xlu0
  %v2758 = vpop.trf.xlu0
  %v2759 = vpop.trf.xlu0
  %v2760 = vpop.trf.xlu0
  %v2761 = vpop.trf.xlu0
  %v2762 = vpop.trf.xlu0
  %v2763 = vpop.trf.xlu0
  %v2764 = vpop.trf.xlu0
  %v2765 = vpop.trf.xlu0
  %v2766 = vpop.trf.xlu0
  %v2767 = vpop.trf.xlu0
  %v2768 = vpop.trf.xlu0
  %v2769 = vpop.trf.xlu0
  %2770 = vst.msk [vmem:[%s9] sm:$0xff] %vm70, %v2754
  %2771 = vst.msk [vmem:[%s9 + $0x8] sm:$0xff] %vm70, %v2755
  %2772 = vst.msk [vmem:[%s9 + $0x10] sm:$0xff] %vm70, %v2756
  %2773 = vst.msk [vmem:[%s9 + $0x18] sm:$0xff] %vm70, %v2757
  %2774 = vst.msk [vmem:[%s9 + $0x20] sm:$0xff] %vm70, %v2758
  %2775 = vst.msk [vmem:[%s9 + $0x28] sm:$0xff] %vm70, %v2759
  %2776 = vst.msk [vmem:[%s9 + $0x30] sm:$0xff] %vm70, %v2760
  %2777 = vst.msk [vmem:[%s9 + $0x38] sm:$0xff] %vm70, %v2761
  %2778 = vxpose.xlu0.b32.start [1/16] %v1496, 128
  %2779 = vxpose.xlu0.b32.cont [2/16] %v1497, 128
  %2780 = vxpose.xlu0.b32.cont [3/16] %v1498, 128
  %2781 = vxpose.xlu0.b32.cont [4/16] %v1499, 128
  %2782 = vxpose.xlu0.b32.cont [5/16] 0.0, 128
  %2783 = vxpose.xlu0.b32.cont [6/16] 0.0, 128
  %2784 = vxpose.xlu0.b32.cont [7/16] 0.0, 128
  %2785 = vxpose.xlu0.b32.cont [8/16] 0.0, 128
  %2786 = vxpose.xlu0.b32.cont [9/16] 0.0, 128
  %2787 = vxpose.xlu0.b32.cont [10/16] 0.0, 128
  %2788 = vxpose.xlu0.b32.cont [11/16] 0.0, 128
  %2789 = vxpose.xlu0.b32.cont [12/16] 0.0, 128
  %2790 = vxpose.xlu0.b32.cont [13/16] 0.0, 128
  %2791 = vxpose.xlu0.b32.cont [14/16] 0.0, 128
  %2792 = vxpose.xlu0.b32.cont [15/16] 0.0, 128
  %2793 = vxpose.xlu0.b32.end [16/16] 0.0, 128
  %v2794 = vpop.trf.xlu0
  %v2795 = vpop.trf.xlu0
  %v2796 = vpop.trf.xlu0
  %v2797 = vpop.trf.xlu0
  %v2798 = vpop.trf.xlu0
  %v2799 = vpop.trf.xlu0
  %v2800 = vpop.trf.xlu0
  %v2801 = vpop.trf.xlu0
  %v2802 = vpop.trf.xlu0
  %v2803 = vpop.trf.xlu0
  %v2804 = vpop.trf.xlu0
  %v2805 = vpop.trf.xlu0
  %v2806 = vpop.trf.xlu0
  %v2807 = vpop.trf.xlu0
  %v2808 = vpop.trf.xlu0
  %v2809 = vpop.trf.xlu0
  %2810 = vst.msk [vmem:[%s10] sm:$0xff] %vm837, %v2794
  %2811 = vst.msk [vmem:[%s10 + $0x8] sm:$0xff] %vm837, %v2795
  %2812 = vst.msk [vmem:[%s10 + $0x10] sm:$0xff] %vm837, %v2796
  %2813 = vst.msk [vmem:[%s10 + $0x18] sm:$0xff] %vm837, %v2797
  %2814 = vst.msk [vmem:[%s10 + $0x20] sm:$0xff] %vm837, %v2798
  %2815 = vst.msk [vmem:[%s10 + $0x28] sm:$0xff] %vm837, %v2799
  %2816 = vst.msk [vmem:[%s10 + $0x30] sm:$0xff] %vm837, %v2800
  %2817 = vst.msk [vmem:[%s10 + $0x38] sm:$0xff] %vm837, %v2801
  // Predicated region
  $region38: #{causal_estimator_forward.1} parent=0 // pred_check
    _
  $region39: #{causal_estimator_forward.1} parent=0 // pred_check_branch
    %2819 = sbr.rel (0) target = $region41
  $region40: #{causal_estimator_forward.1} parent=0 // pred_region
    _
  $region41: #{causal_estimator_forward.1} parent=0 // pred_fallthru
    _
  // Predicated region
  $region42: #{causal_estimator_forward.1} parent=0 // pred_check
    _
  $region43: #{causal_estimator_forward.1} parent=0 // pred_check_branch
    %2821 = sbr.rel (0) target = $region45
  $region44: #{causal_estimator_forward.1} parent=0 // pred_region
    _
  $region45: #{causal_estimator_forward.1} parent=0 // pred_fallthru
    _
  // Predicated region
  $region46: #{causal_estimator_forward.1} parent=0 // pred_check
    _
  $region47: #{causal_estimator_forward.1} parent=0 // pred_check_branch
    %2823 = sbr.rel (0) target = $region49
  $region48: #{causal_estimator_forward.1} parent=0 // pred_region
    _
  $region49: #{causal_estimator_forward.1} parent=0 // pred_fallthru
    _
  // Predicated region
  $region50: #{causal_estimator_forward.1} parent=0 // pred_check
    _
  $region51: #{causal_estimator_forward.1} parent=0 // pred_check_branch
    %2825 = sbr.rel (0) target = $region53
  $region52: #{causal_estimator_forward.1} parent=0 // pred_region
    _
  $region53: #{causal_estimator_forward.1} parent=0 // pred_fallthru
    _

</llo_original>
